<compile_context>
chip_gen: v6e
topology: v6e:2x2x1
jax: 0.10.0
libtpu: 0.0.40
codegen_flags: <defaults>
</compile_context>

<pallas_src>
from functools import partial

import numpy as np
import jax
import jax.numpy as jnp
from jax.experimental import pallas as pl
from jax.experimental.pallas import tpu as pltpu


# --------------------------------------------------------------------------- #
# Kernels
# --------------------------------------------------------------------------- #
def _conv_block_kernel(*refs, downsample):
    """One grid step = one batch element of a conv_Block:
    im2col matmul (bf16 x bf16 -> f32) + bias + ReLU (+ 2x2 avg-pool as one
    bf16 matmul with a constant 0.25-selection matrix)."""
    if downsample:
        p_ref, w_ref, b_ref, pool_ref, o_ref = refs
    else:
        p_ref, w_ref, b_ref, o_ref = refs

    # Single MXU matmul: (H*W, K*K*Cin) @ (K*K*Cin, Cout), bf16 in / f32 accum.
    acc = jnp.dot(p_ref[0], w_ref[...], preferred_element_type=jnp.float32)

    # Bias + ReLU in f32 on the VPU.
    h = jnp.maximum(acc + b_ref[...], 0.0)

    if downsample:
        # 2x2 average pool as ONE bf16 matmul (single-pass MXU; 0.25 exact in bf16).
        h = jnp.dot(pool_ref[...], h.astype(pool_ref.dtype),
                    preferred_element_type=jnp.float32)

    # Single full-block store per grid step (bf16 output).
    o_ref[0] = h.astype(o_ref.dtype)


def _conv_block_head_kernel(p_ref, w_ref, b_ref, lw_ref, lb_ref, o_ref, *,
                            n_batch, rows_per_batch):
    """Last conv_Block fused with the head.  conv (im2col matmul, bf16 in / f32
    acc) + bias + ReLU, then adaptive_avg_pool2d(1,1) as a per-batch global
    spatial mean (avg_pool2d(2) followed by a global mean IS the global mean,
    so the 2x2 pool is folded away), Linear(C,1) as a VPU multiply + XLU lane
    reduce, and sigmoid."""
    acc = jnp.dot(p_ref[...], w_ref[...], preferred_element_type=jnp.float32)
    h = jnp.maximum(acc + b_ref[...], 0.0)                    # (N*R, Cout) f32

    # Per-batch global spatial mean (static, tile-aligned sublane slices).
    feats = jnp.concatenate(
        [jnp.mean(h[i * rows_per_batch:(i + 1) * rows_per_batch], axis=0,
                  keepdims=True)
         for i in range(n_batch)], axis=0)                    # (N, Cout) f32

    # Linear(C, 1): VPU multiply + lane reduce (avoids a 1-wide MXU dot).
    logit = jnp.sum(feats * lw_ref[...], axis=-1, keepdims=True) + lb_ref[...]
    o_ref[...] = 1.0 / (1.0 + jnp.exp(-logit))                # sigmoid, (N, 1)


# --------------------------------------------------------------------------- #
# Wrapper-side glue (plain JAX): im2col + pool matrix built once
# --------------------------------------------------------------------------- #
def _im2col(x_nhwc, K, pad):
    """(N, H, W, C) -> (N, H*W, K*K*C) patch slab (9 shift-gathers, built once)."""
    N, H, W, C = x_nhwc.shape
    xp = jnp.pad(x_nhwc, ((0, 0), (pad, pad), (pad, pad), (0, 0)))
    taps = [xp[:, dy:dy + H, dx:dx + W, :] for dy in range(K) for dx in range(K)]
    patches = jnp.concatenate(taps, axis=-1)
    return patches.reshape(N, H * W, K * K * C)


def _pool_matrix(H, W):
    """(Ho*Wo, H*W) constant matrix implementing avg_pool2d(2) over one image."""
    Ho, Wo = H // 2, W // 2
    P = np.zeros((Ho * Wo, H * W), np.float32)
    for ho in range(Ho):
        for wo in range(Wo):
            r = ho * Wo + wo
            for i in range(2):
                for j in range(2):
                    P[r, (2 * ho + i) * W + (2 * wo + j)] = 0.25
    return jnp.asarray(P)


def _conv_weight_matrix(weight_oihw, dtype):
    """OIHW conv weight -> (K*K*Cin, Cout) im2col matrix (tap-major, cin-minor)."""
    Cout, Cin, K, _ = weight_oihw.shape
    return jnp.transpose(weight_oihw, (2, 3, 1, 0)).reshape(K * K * Cin,
                                                            Cout).astype(dtype)


# --------------------------------------------------------------------------- #
# conv_Block pallas_call (non-final layers)
# --------------------------------------------------------------------------- #
def _conv_block_nhwc(x_nhwc, weight_oihw, bias, *, downsample,
                     compute_dtype=jnp.bfloat16):
    """conv_Block forward in NHWC (weight assumed already spectral-normalised).
    Output is bf16 NHWC (stays bf16 between layers)."""
    N, H, W, Cin = x_nhwc.shape
    Cout, Cin_w, K, K2 = weight_oihw.shape
    assert Cin_w == Cin and K == K2 and K % 2 == 1
    pad = (K - 1) // 2
    if downsample:
        assert H % 2 == 0 and W % 2 == 0, "avg_pool2d(2) expects even H, W here"

    TM = H * W                                     # im2col rows per grid step
    Ho, Wo = (H // 2, W // 2) if downsample else (H, W)
    TMo = Ho * Wo
    KKC = K * K * Cin

    patches = _im2col(x_nhwc.astype(compute_dtype), K, pad)   # (N, TM, KKC) bf16
    w = _conv_weight_matrix(weight_oihw, compute_dtype)       # (KKC, Cout) bf16
    b = bias.reshape(1, Cout).astype(jnp.float32)

    inputs = [patches, w, b]
    in_specs = [
        pl.BlockSpec((1, TM, KKC), lambda n: (n, 0, 0)),
        pl.BlockSpec((KKC, Cout), lambda n: (0, 0)),
        pl.BlockSpec((1, Cout), lambda n: (0, 0)),
    ]
    pool_bytes = 0
    if downsample:
        pool = _pool_matrix(H, W).astype(compute_dtype)        # bf16, 0.25 exact
        inputs.append(pool)
        in_specs.append(pl.BlockSpec((TMo, TM), lambda n: (0, 0)))
        pool_bytes = pool.size * 2

    flops = 2 * N * TM * KKC * Cout
    if downsample:
        flops += 2 * N * TMo * TM * Cout
    bytes_accessed = (patches.size * 2 + w.size * 2 + b.size * 4 + pool_bytes
                      + N * TMo * Cout * 2)

    out = pl.pallas_call(
        partial(_conv_block_kernel, downsample=downsample),
        out_shape=jax.ShapeDtypeStruct((N, TMo, Cout), compute_dtype),
        grid_spec=pltpu.PrefetchScalarGridSpec(
            num_scalar_prefetch=0,
            grid=(N,),
            in_specs=in_specs,
            out_specs=pl.BlockSpec((1, TMo, Cout), lambda n: (n, 0, 0)),
        ),
        compiler_params=pltpu.CompilerParams(
            dimension_semantics=("parallel",),
        ),
        cost_estimate=pl.CostEstimate(flops=int(flops), transcendentals=0,
                                      bytes_accessed=int(bytes_accessed)),
    )(*inputs)

    return out.reshape(N, Ho, Wo, Cout)


# --------------------------------------------------------------------------- #
# Last conv_Block fused with the head (single grid step)
# --------------------------------------------------------------------------- #
def _conv_block_head_nhwc(x_nhwc, weight_oihw, bias, lin_w, lin_b, *,
                          compute_dtype=jnp.bfloat16):
    N, H, W, Cin = x_nhwc.shape
    Cout, Cin_w, K, K2 = weight_oihw.shape
    assert Cin_w == Cin and K == K2 and K % 2 == 1
    pad = (K - 1) // 2
    R = H * W                                      # rows per batch element
    KKC = K * K * Cin

    patches = _im2col(x_nhwc.astype(compute_dtype), K, pad).reshape(N * R, KKC)
    w = _conv_weight_matrix(weight_oihw, compute_dtype)
    b = bias.reshape(1, Cout).astype(jnp.float32)
    lw = lin_w.reshape(1, Cout).astype(jnp.float32)   # torch Linear weight (1, C)
    lb = lin_b.reshape(1, 1).astype(jnp.float32)

    flops = 2 * N * R * KKC * Cout + 2 * N * Cout
    bytes_accessed = (patches.size * 2 + w.size * 2
                      + (b.size + lw.size + lb.size + N) * 4)

    return pl.pallas_call(
        partial(_conv_block_head_kernel, n_batch=N, rows_per_batch=R),
        out_shape=jax.ShapeDtypeStruct((N, 1), jnp.float32),
        grid_spec=pltpu.PrefetchScalarGridSpec(
            num_scalar_prefetch=0,
            grid=(1,),
            in_specs=[pl.BlockSpec((N * R, KKC), lambda i: (0, 0)),
                      pl.BlockSpec((KKC, Cout), lambda i: (0, 0)),
                      pl.BlockSpec((1, Cout), lambda i: (0, 0)),
                      pl.BlockSpec((1, Cout), lambda i: (0, 0)),
                      pl.BlockSpec((1, 1), lambda i: (0, 0))],
            out_specs=pl.BlockSpec((N, 1), lambda i: (0, 0)),
        ),
        compiler_params=pltpu.CompilerParams(
            dimension_semantics=("arbitrary",),
        ),
        cost_estimate=pl.CostEstimate(flops=int(flops), transcendentals=int(N),
                                      bytes_accessed=int(bytes_accessed)),
    )(patches, w, b, lw, lb)


# --------------------------------------------------------------------------- #
# Full Discriminator forward
# --------------------------------------------------------------------------- #
def discriminator_forward(x_nchw, conv_params, linear_params,
                          downsample=(True, True, True)):
    h = jnp.transpose(x_nchw, (0, 2, 3, 1))        # NCHW -> NHWC once
    num_layers = len(conv_params)
    lin_w, lin_b = linear_params
    for i, ((w, b), ds) in enumerate(zip(conv_params, downsample)):
        if i == num_layers - 1:
            # Head fused into the last conv_Block; the 2x2 pool (if any) is
            # subsumed by the global spatial mean of adaptive_avg_pool2d(1,1).
            return _conv_block_head_nhwc(h, w, b, lin_w, lin_b)
        h = _conv_block_nhwc(h, w, b, downsample=ds)
    raise ValueError("Discriminator needs at least one conv layer")


# --------------------------------------------------------------------------- #
# Parameter setup (plain-JAX glue mirroring the PyTorch module inits)
# --------------------------------------------------------------------------- #
def spectral_normalize(weight_oihw, key, n_power_iterations=1, eps=1e-12):
    """PyTorch-style spectral norm of a conv weight (power iteration with a
    deterministic random u).  Plain-JAX parameter preprocessing."""
    # TODO(synk): persist the power-iteration vector u across forward calls to
    # match torch.nn.utils.spectral_norm's training-time statefulness.
    cout = weight_oihw.shape[0]
    w_mat = weight_oihw.reshape(cout, -1)
    u = jax.random.normal(key, (cout,), jnp.float32)
    u = u / (jnp.linalg.norm(u) + eps)
    v = None
    for _ in range(n_power_iterations):
        v = w_mat.T @ u
        v = v / (jnp.linalg.norm(v) + eps)
        u = w_mat @ v
        u = u / (jnp.linalg.norm(u) + eps)
    sigma = u @ (w_mat @ v)
    return weight_oihw / sigma


def init_discriminator_params(key, in_channels, num_layers=3, sn=True):
    convs = []
    channels = 32
    cin = in_channels
    k = key
    for i in range(num_layers):
        cout = channels if i == 0 else channels * 2
        k, kw, kb, ku = jax.random.split(k, 4)
        w = 0.01 * jax.random.normal(kw, (cout, cin, 3, 3), jnp.float32)
        bound = 1.0 / np.sqrt(cin * 3 * 3)
        b = jax.random.uniform(kb, (cout,), jnp.float32, -bound, bound)
        if sn:
            w = spectral_normalize(w, ku, n_power_iterations=1)
        convs.append((w, b))
        if i > 0:
            channels *= 2
        cin = cout
    k, kw, kb = jax.random.split(k, 3)
    bound = 1.0 / np.sqrt(channels)
    lin_w = jax.random.uniform(kw, (1, channels), jnp.float32, -bound, bound)
    lin_b = jax.random.uniform(kb, (1,), jnp.float32, -bound, bound)
    return convs, (lin_w, lin_b)


# --------------------------------------------------------------------------- #
# Pure-JAX references
# --------------------------------------------------------------------------- #
def _reference_forward(x_nchw, conv_params, linear_params, downsample, matched):
    """matched=True mirrors the kernel numerics (bf16 matmul operands, f32
    accumulation, bf16 round before pooling, last-layer pool folded into the
    global mean).  matched=False is the full-f32 PyTorch-semantics reference."""
    h = x_nchw
    nl = len(conv_params)
    op_dtype = jnp.bfloat16 if matched else jnp.float32
    for i, ((w, b), ds) in enumerate(zip(conv_params, downsample)):
        y = jax.lax.conv_general_dilated(
            h.astype(op_dtype), w.astype(op_dtype),
            window_strides=(1, 1), padding=((1, 1), (1, 1)),
            dimension_numbers=("NCHW", "OIHW", "NCHW"),
            preferred_element_type=jnp.float32)
        h = jnp.maximum(y + b[None, :, None, None], 0.0)
        last = (i == nl - 1)
        if ds and not (matched and last):
            hp = h.astype(op_dtype).astype(jnp.float32) if matched else h
            h = jax.lax.reduce_window(hp, 0.0, jax.lax.add,
                                      (1, 1, 2, 2), (1, 1, 2, 2), "VALID") * 0.25
    feats = jnp.mean(h, axis=(2, 3))
    lin_w, lin_b = linear_params
    return jax.nn.sigmoid(feats @ lin_w.T + lin_b)


if __name__ == "__main__":
    key = jax.random.PRNGKey(0)
    kx, kp = jax.random.split(key)

    N, Cin, H, W = 2, 4, 16, 16          # small shapes consistent with the module
    downsample = (True, True, True)

    x = jax.random.normal(kx, (N, Cin, H, W), jnp.float32)
    conv_params, linear_params = init_discriminator_params(kp, Cin, num_layers=3)

    fwd = jax.jit(partial(discriminator_forward, downsample=downsample))
    out = jax.block_until_ready(fwd(x, conv_params, linear_params))
    assert out.shape == (N, 1)

    # Matched-numerics reference (bf16 matmul operands, f32 accumulation).
    ref_matched = _reference_forward(x, conv_params, linear_params, downsample,
                                     matched=True)
    # Full-f32 reference (PyTorch semantics); loose tol covers bf16 matmuls.
    ref_f32 = _reference_forward(x, conv_params, linear_params, downsample,
                                 matched=False)

    np.testing.assert_allclose(np.asarray(out), np.asarray(ref_matched),
                               rtol=2e-3, atol=2e-4)
    np.testing.assert_allclose(np.asarray(out), np.asarray(ref_f32),
                               rtol=0.0, atol=2e-2)
    print("KERNEL_OK")
</pallas_src>

<mosaic_0001>
module attributes {stable_mosaic.version = 11 : i64} {
  func.func @_conv_block_kernel(%arg0: i32, %arg1: memref<1x256x36xbf16, #tpu.memory_space<vmem>>, %arg2: memref<36x32xbf16, #tpu.memory_space<vmem>>, %arg3: memref<1x32xf32, #tpu.memory_space<vmem>>, %arg4: memref<64x256xbf16, #tpu.memory_space<vmem>>, %arg5: memref<1x64x32xbf16, #tpu.memory_space<vmem>>) attributes {dimension_semantics = [#tpu.dimension_semantics<parallel>], iteration_bounds = array<i64: 2>, scalar_prefetch = 0 : i64, scratch_operands = 0 : i64, tpu.core_type = #tpu.core_type<tc>, window_params = [{transform_indices = @transform_0, window_bounds = array<i64: 1, 256, 36>}, {pipeline_mode = #tpu.pipeline_mode<synchronous>, transform_indices = @transform_1, window_bounds = array<i64: 36, 32>}, {pipeline_mode = #tpu.pipeline_mode<synchronous>, transform_indices = @transform_2, window_bounds = array<i64: 1, 32>}, {pipeline_mode = #tpu.pipeline_mode<synchronous>, transform_indices = @transform_3, window_bounds = array<i64: 64, 256>}, {transform_indices = @transform_4, window_bounds = array<i64: 1, 64, 32>}]} {
    %c0 = arith.constant 0 : index
    %c0_0 = arith.constant 0 : index
    %c0_1 = arith.constant 0 : index
    %0 = vector.load %arg1[%c0, %c0_0, %c0_1] : memref<1x256x36xbf16, #tpu.memory_space<vmem>>, vector<1x256x36xbf16>
    %1 = vector.shape_cast %0 : vector<1x256x36xbf16> to vector<256x36xbf16>
    %c0_2 = arith.constant 0 : index
    %c0_3 = arith.constant 0 : index
    %2 = vector.load %arg2[%c0_2, %c0_3] : memref<36x32xbf16, #tpu.memory_space<vmem>>, vector<36x32xbf16>
    %cst = arith.constant dense<0.000000e+00> : vector<256x32xf32>
    %3 = tpu.matmul %1, %2, %cst {dimension_numbers = #tpu.dot_dimension_numbers<[1], [0], [0], [1], [0, 0, 1, 1], [], []>} : vector<256x36xbf16>, vector<36x32xbf16>, vector<256x32xf32> -> vector<256x32xf32>
    %c0_4 = arith.constant 0 : index
    %c0_5 = arith.constant 0 : index
    %4 = vector.load %arg3[%c0_4, %c0_5] : memref<1x32xf32, #tpu.memory_space<vmem>>, vector<1x32xf32>
    %5 = vector.broadcast %4 : vector<1x32xf32> to vector<256x32xf32>
    %6 = arith.addf %3, %5 : vector<256x32xf32>
    %cst_6 = arith.constant 0.000000e+00 : f32
    %7 = vector.broadcast %cst_6 : f32 to vector<256x32xf32>
    %8 = arith.maximumf %6, %7 : vector<256x32xf32>
    %c0_7 = arith.constant 0 : index
    %c0_8 = arith.constant 0 : index
    %9 = vector.load %arg4[%c0_7, %c0_8] : memref<64x256xbf16, #tpu.memory_space<vmem>>, vector<64x256xbf16>
    %10 = arith.truncf %8 : vector<256x32xf32> to vector<256x32xbf16>
    %cst_9 = arith.constant dense<0.000000e+00> : vector<64x32xf32>
    %11 = tpu.matmul %9, %10, %cst_9 {dimension_numbers = #tpu.dot_dimension_numbers<[1], [0], [0], [1], [0, 0, 1, 1], [], []>} : vector<64x256xbf16>, vector<256x32xbf16>, vector<64x32xf32> -> vector<64x32xf32>
    %12 = arith.truncf %11 : vector<64x32xf32> to vector<64x32xbf16>
    %c0_10 = arith.constant 0 : index
    %c0_11 = arith.constant 0 : index
    %c0_12 = arith.constant 0 : index
    %13 = vector.load %arg5[%c0_10, %c0_11, %c0_12] : memref<1x64x32xbf16, #tpu.memory_space<vmem>>, vector<1x64x32xbf16>
    %14 = vector.shape_cast %13 : vector<1x64x32xbf16> to vector<64x32xbf16>
    %15 = vector.shape_cast %12 : vector<64x32xbf16> to vector<1x64x32xbf16>
    tpu.vector_store %arg5[%c0_10, %c0_11, %c0_12], %15 {strides = array<i32>} : memref<1x64x32xbf16, #tpu.memory_space<vmem>>, vector<1x64x32xbf16>,
    return
  }
  func.func @transform_0(%arg0: i32) -> (i32, i32, i32) {
    %c0_i32 = arith.constant 0 : i32
    %c0_i32_0 = arith.constant 0 : i32
    %c0_i32_1 = arith.constant 0 : i32
    return %arg0, %c0_i32, %c0_i32_0 : i32, i32, i32
  }
  func.func @transform_1(%arg0: i32) -> (i32, i32) {
    %c0_i32 = arith.constant 0 : i32
    %c0_i32_0 = arith.constant 0 : i32
    %c0_i32_1 = arith.constant 0 : i32
    return %c0_i32, %c0_i32_0 : i32, i32
  }
  func.func @transform_2(%arg0: i32) -> (i32, i32) {
    %c0_i32 = arith.constant 0 : i32
    %c0_i32_0 = arith.constant 0 : i32
    %c0_i32_1 = arith.constant 0 : i32
    return %c0_i32, %c0_i32_0 : i32, i32
  }
  func.func @transform_3(%arg0: i32) -> (i32, i32) {
    %c0_i32 = arith.constant 0 : i32
    %c0_i32_0 = arith.constant 0 : i32
    %c0_i32_1 = arith.constant 0 : i32
    return %c0_i32, %c0_i32_0 : i32, i32
  }
  func.func @transform_4(%arg0: i32) -> (i32, i32, i32) {
    %c0_i32 = arith.constant 0 : i32
    %c0_i32_0 = arith.constant 0 : i32
    %c0_i32_1 = arith.constant 0 : i32
    return %arg0, %c0_i32, %c0_i32_0 : i32, i32, i32
  }
}

module attributes {stable_mosaic.version = 11 : i64} {
  func.func @_conv_block_kernel(%arg0: i32, %arg1: memref<1x64x288xbf16, #tpu.memory_space<vmem>>, %arg2: memref<288x64xbf16, #tpu.memory_space<vmem>>, %arg3: memref<1x64xf32, #tpu.memory_space<vmem>>, %arg4: memref<16x64xbf16, #tpu.memory_space<vmem>>, %arg5: memref<1x16x64xbf16, #tpu.memory_space<vmem>>) attributes {dimension_semantics = [#tpu.dimension_semantics<parallel>], iteration_bounds = array<i64: 2>, scalar_prefetch = 0 : i64, scratch_operands = 0 : i64, tpu.core_type = #tpu.core_type<tc>, window_params = [{transform_indices = @transform_0, window_bounds = array<i64: 1, 64, 288>}, {pipeline_mode = #tpu.pipeline_mode<synchronous>, transform_indices = @transform_1, window_bounds = array<i64: 288, 64>}, {pipeline_mode = #tpu.pipeline_mode<synchronous>, transform_indices = @transform_2, window_bounds = array<i64: 1, 64>}, {pipeline_mode = #tpu.pipeline_mode<synchronous>, transform_indices = @transform_3, window_bounds = array<i64: 16, 64>}, {transform_indices = @transform_4, window_bounds = array<i64: 1, 16, 64>}]} {
    %c0 = arith.constant 0 : index
    %c0_0 = arith.constant 0 : index
    %c0_1 = arith.constant 0 : index
    %0 = vector.load %arg1[%c0, %c0_0, %c0_1] : memref<1x64x288xbf16, #tpu.memory_space<vmem>>, vector<1x64x288xbf16>
    %1 = vector.shape_cast %0 : vector<1x64x288xbf16> to vector<64x288xbf16>
    %c0_2 = arith.constant 0 : index
    %c0_3 = arith.constant 0 : index
    %2 = vector.load %arg2[%c0_2, %c0_3] : memref<288x64xbf16, #tpu.memory_space<vmem>>, vector<288x64xbf16>
    %cst = arith.constant dense<0.000000e+00> : vector<64x64xf32>
    %3 = tpu.matmul %1, %2, %cst {dimension_numbers = #tpu.dot_dimension_numbers<[1], [0], [0], [1], [0, 0, 1, 1], [], []>} : vector<64x288xbf16>, vector<288x64xbf16>, vector<64x64xf32> -> vector<64x64xf32>
    %c0_4 = arith.constant 0 : index
    %c0_5 = arith.constant 0 : index
    %4 = vector.load %arg3[%c0_4, %c0_5] : memref<1x64xf32, #tpu.memory_space<vmem>>, vector<1x64xf32>
    %5 = vector.broadcast %4 : vector<1x64xf32> to vector<64x64xf32>
    %6 = arith.addf %3, %5 : vector<64x64xf32>
    %cst_6 = arith.constant 0.000000e+00 : f32
    %7 = vector.broadcast %cst_6 : f32 to vector<64x64xf32>
    %8 = arith.maximumf %6, %7 : vector<64x64xf32>
    %c0_7 = arith.constant 0 : index
    %c0_8 = arith.constant 0 : index
    %9 = vector.load %arg4[%c0_7, %c0_8] : memref<16x64xbf16, #tpu.memory_space<vmem>>, vector<16x64xbf16>
    %10 = arith.truncf %8 : vector<64x64xf32> to vector<64x64xbf16>
    %cst_9 = arith.constant dense<0.000000e+00> : vector<16x64xf32>
    %11 = tpu.matmul %9, %10, %cst_9 {dimension_numbers = #tpu.dot_dimension_numbers<[1], [0], [0], [1], [0, 0, 1, 1], [], []>} : vector<16x64xbf16>, vector<64x64xbf16>, vector<16x64xf32> -> vector<16x64xf32>
    %12 = arith.truncf %11 : vector<16x64xf32> to vector<16x64xbf16>
    %c0_10 = arith.constant 0 : index
    %c0_11 = arith.constant 0 : index
    %c0_12 = arith.constant 0 : index
    %13 = vector.load %arg5[%c0_10, %c0_11, %c0_12] : memref<1x16x64xbf16, #tpu.memory_space<vmem>>, vector<1x16x64xbf16>
    %14 = vector.shape_cast %13 : vector<1x16x64xbf16> to vector<16x64xbf16>
    %15 = vector.shape_cast %12 : vector<16x64xbf16> to vector<1x16x64xbf16>
    tpu.vector_store %arg5[%c0_10, %c0_11, %c0_12], %15 {strides = array<i32>} : memref<1x16x64xbf16, #tpu.memory_space<vmem>>, vector<1x16x64xbf16>,
    return
  }
  func.func @transform_0(%arg0: i32) -> (i32, i32, i32) {
    %c0_i32 = arith.constant 0 : i32
    %c0_i32_0 = arith.constant 0 : i32
    %c0_i32_1 = arith.constant 0 : i32
    return %arg0, %c0_i32, %c0_i32_0 : i32, i32, i32
  }
  func.func @transform_1(%arg0: i32) -> (i32, i32) {
    %c0_i32 = arith.constant 0 : i32
    %c0_i32_0 = arith.constant 0 : i32
    %c0_i32_1 = arith.constant 0 : i32
    return %c0_i32, %c0_i32_0 : i32, i32
  }
  func.func @transform_2(%arg0: i32) -> (i32, i32) {
    %c0_i32 = arith.constant 0 : i32
    %c0_i32_0 = arith.constant 0 : i32
    %c0_i32_1 = arith.constant 0 : i32
    return %c0_i32, %c0_i32_0 : i32, i32
  }
  func.func @transform_3(%arg0: i32) -> (i32, i32) {
    %c0_i32 = arith.constant 0 : i32
    %c0_i32_0 = arith.constant 0 : i32
    %c0_i32_1 = arith.constant 0 : i32
    return %c0_i32, %c0_i32_0 : i32, i32
  }
  func.func @transform_4(%arg0: i32) -> (i32, i32, i32) {
    %c0_i32 = arith.constant 0 : i32
    %c0_i32_0 = arith.constant 0 : i32
    %c0_i32_1 = arith.constant 0 : i32
    return %arg0, %c0_i32, %c0_i32_0 : i32, i32, i32
  }
}

module attributes {stable_mosaic.version = 11 : i64} {
  func.func @_conv_block_head_kernel(%arg0: i32, %arg1: memref<32x576xbf16, #tpu.memory_space<vmem>>, %arg2: memref<576x128xbf16, #tpu.memory_space<vmem>>, %arg3: memref<1x128xf32, #tpu.memory_space<vmem>>, %arg4: memref<1x128xf32, #tpu.memory_space<vmem>>, %arg5: memref<1x1xf32, #tpu.memory_space<vmem>>, %arg6: memref<2x1xf32, #tpu.memory_space<vmem>>) attributes {dimension_semantics = [#tpu.dimension_semantics<arbitrary>], iteration_bounds = array<i64: 1>, scalar_prefetch = 0 : i64, scratch_operands = 0 : i64, tpu.core_type = #tpu.core_type<tc>, window_params = [{pipeline_mode = #tpu.pipeline_mode<synchronous>, transform_indices = @transform_0, window_bounds = array<i64: 32, 576>}, {pipeline_mode = #tpu.pipeline_mode<synchronous>, transform_indices = @transform_1, window_bounds = array<i64: 576, 128>}, {pipeline_mode = #tpu.pipeline_mode<synchronous>, transform_indices = @transform_2, window_bounds = array<i64: 1, 128>}, {pipeline_mode = #tpu.pipeline_mode<synchronous>, transform_indices = @transform_3, window_bounds = array<i64: 1, 128>}, {pipeline_mode = #tpu.pipeline_mode<synchronous>, transform_indices = @transform_4, window_bounds = array<i64: 1, 1>}, {pipeline_mode = #tpu.pipeline_mode<synchronous>, transform_indices = @transform_5, window_bounds = array<i64: 2, 1>}]} {
    %c0 = arith.constant 0 : index
    %c0_0 = arith.constant 0 : index
    %0 = vector.load %arg1[%c0, %c0_0] : memref<32x576xbf16, #tpu.memory_space<vmem>>, vector<32x576xbf16>
    %c0_1 = arith.constant 0 : index
    %c0_2 = arith.constant 0 : index
    %1 = vector.load %arg2[%c0_1, %c0_2] : memref<576x128xbf16, #tpu.memory_space<vmem>>, vector<576x128xbf16>
    %cst = arith.constant dense<0.000000e+00> : vector<32x128xf32>
    %2 = tpu.matmul %0, %1, %cst {dimension_numbers = #tpu.dot_dimension_numbers<[1], [0], [0], [1], [0, 0, 1, 1], [], []>} : vector<32x576xbf16>, vector<576x128xbf16>, vector<32x128xf32> -> vector<32x128xf32>
    %c0_3 = arith.constant 0 : index
    %c0_4 = arith.constant 0 : index
    %3 = vector.load %arg3[%c0_3, %c0_4] : memref<1x128xf32, #tpu.memory_space<vmem>>, vector<1x128xf32>
    %4 = vector.broadcast %3 : vector<1x128xf32> to vector<32x128xf32>
    %5 = arith.addf %2, %4 : vector<32x128xf32>
    %cst_5 = arith.constant 0.000000e+00 : f32
    %6 = vector.broadcast %cst_5 : f32 to vector<32x128xf32>
    %7 = arith.maximumf %5, %6 : vector<32x128xf32>
    %8 = vector.extract_strided_slice %7 {offsets = [0, 0], sizes = [16, 128], strides = [1, 1]} : vector<32x128xf32> to vector<16x128xf32>
    %cst_6 = arith.constant dense<0.000000e+00> : vector<128xf32>
    %9 = vector.multi_reduction <add>, %8, %cst_6 [0] : vector<16x128xf32> to vector<128xf32>
    %10 = vector.shape_cast %9 : vector<128xf32> to vector<1x128xf32>
    %cst_7 = arith.constant 1.600000e+01 : f32
    %11 = vector.broadcast %cst_7 : f32 to vector<1x128xf32>
    %12 = arith.divf %10, %11 : vector<1x128xf32>
    %13 = vector.extract_strided_slice %7 {offsets = [16, 0], sizes = [16, 128], strides = [1, 1]} : vector<32x128xf32> to vector<16x128xf32>
    %cst_8 = arith.constant dense<0.000000e+00> : vector<128xf32>
    %14 = vector.multi_reduction <add>, %13, %cst_8 [0] : vector<16x128xf32> to vector<128xf32>
    %15 = vector.shape_cast %14 : vector<128xf32> to vector<1x128xf32>
    %cst_9 = arith.constant 1.600000e+01 : f32
    %16 = vector.broadcast %cst_9 : f32 to vector<1x128xf32>
    %17 = arith.divf %15, %16 : vector<1x128xf32>
    %18 = tpu.concatenate %12, %17 in 0 : vector<1x128xf32>, vector<1x128xf32> -> vector<2x128xf32>
    %c0_10 = arith.constant 0 : index
    %c0_11 = arith.constant 0 : index
    %19 = vector.load %arg4[%c0_10, %c0_11] : memref<1x128xf32, #tpu.memory_space<vmem>>, vector<1x128xf32>
    %20 = vector.broadcast %19 : vector<1x128xf32> to vector<2x128xf32>
    %21 = arith.mulf %18, %20 : vector<2x128xf32>
    %cst_12 = arith.constant dense<0.000000e+00> : vector<2xf32>
    %22 = vector.multi_reduction <add>, %21, %cst_12 [1] : vector<2x128xf32> to vector<2xf32>
    %23 = vector.shape_cast %22 : vector<2xf32> to vector<2x1xf32>
    %c0_13 = arith.constant 0 : index
    %c0_14 = arith.constant 0 : index
    %24 = vector.load %arg5[%c0_13, %c0_14] : memref<1x1xf32, #tpu.memory_space<vmem>>, vector<1x1xf32>
    %25 = vector.broadcast %24 : vector<1x1xf32> to vector<2x1xf32>
    %26 = arith.addf %23, %25 : vector<2x1xf32>
    %cst_15 = arith.constant 0.000000e+00 : f32
    %27 = vector.broadcast %cst_15 : f32 to vector<2x1xf32>
    %28 = arith.subf %27, %26 : vector<2x1xf32>
    %29 = math.exp %28 : vector<2x1xf32>
    %cst_16 = arith.constant 1.000000e+00 : f32
    %30 = vector.broadcast %cst_16 : f32 to vector<2x1xf32>
    %31 = arith.addf %30, %29 : vector<2x1xf32>
    %cst_17 = arith.constant 1.000000e+00 : f32
    %32 = vector.broadcast %cst_17 : f32 to vector<2x1xf32>
    %33 = arith.divf %32, %31 : vector<2x1xf32>
    %c0_18 = arith.constant 0 : index
    %c0_19 = arith.constant 0 : index
    %34 = vector.load %arg6[%c0_18, %c0_19] : memref<2x1xf32, #tpu.memory_space<vmem>>, vector<2x1xf32>
    tpu.vector_store %arg6[%c0_18, %c0_19], %33 {strides = array<i32>} : memref<2x1xf32, #tpu.memory_space<vmem>>, vector<2x1xf32>,
    return
  }
  func.func @transform_0(%arg0: i32) -> (i32, i32) {
    %c0_i32 = arith.constant 0 : i32
    %c0_i32_0 = arith.constant 0 : i32
    %c0_i32_1 = arith.constant 0 : i32
    return %c0_i32, %c0_i32_0 : i32, i32
  }
  func.func @transform_1(%arg0: i32) -> (i32, i32) {
    %c0_i32 = arith.constant 0 : i32
    %c0_i32_0 = arith.constant 0 : i32
    %c0_i32_1 = arith.constant 0 : i32
    return %c0_i32, %c0_i32_0 : i32, i32
  }
  func.func @transform_2(%arg0: i32) -> (i32, i32) {
    %c0_i32 = arith.constant 0 : i32
    %c0_i32_0 = arith.constant 0 : i32
    %c0_i32_1 = arith.constant 0 : i32
    return %c0_i32, %c0_i32_0 : i32, i32
  }
  func.func @transform_3(%arg0: i32) -> (i32, i32) {
    %c0_i32 = arith.constant 0 : i32
    %c0_i32_0 = arith.constant 0 : i32
    %c0_i32_1 = arith.constant 0 : i32
    return %c0_i32, %c0_i32_0 : i32, i32
  }
  func.func @transform_4(%arg0: i32) -> (i32, i32) {
    %c0_i32 = arith.constant 0 : i32
    %c0_i32_0 = arith.constant 0 : i32
    %c0_i32_1 = arith.constant 0 : i32
    return %c0_i32, %c0_i32_0 : i32, i32
  }
  func.func @transform_5(%arg0: i32) -> (i32, i32) {
    %c0_i32 = arith.constant 0 : i32
    %c0_i32_0 = arith.constant 0 : i32
    %c0_i32_1 = arith.constant 0 : i32
    return %c0_i32, %c0_i32_0 : i32, i32
  }
}

</mosaic_0001>

<llo_original>
// kernel: discriminator_forward.3
$region0: #{discriminator_forward.3}
  #allocation0 [shape = 'u32[]', space=smem, size = 0x4, offset = 0x4, fixed_abs, tag = 'smem constant byte address 0x4 - core index']
  #allocation1 [shape = 'u32[144,128]{1,0:T(1,128)}', space=vmem, size = 0x12000, scoped, tag = 'internal scratch']
  %s0 = inlined_call_operand.vmem [shape: bf16[2,256,36], index: 0, kind: input, shape index: {}]
  %s1 = inlined_call_operand.vmem [shape: bf16[36,32], index: 1, kind: input, shape index: {}]
  %s2 = inlined_call_operand.vmem [shape: f32[1,32], index: 2, kind: input, shape index: {}]
  %s3 = inlined_call_operand.vmem [shape: bf16[64,256], index: 3, kind: input, shape index: {}]
  %s4 = inlined_call_operand.vmem [shape: bf16[2,64,32], index: 4, kind: output, shape index: {}]
  %s5 = sld [smem:[#allocation0]]
  $region49: #{discriminator_forward.3} parent=0
    _
  %s7 = ssub.s32 1, %s5
  %s8 = scalar_select 0, %s7, %s5
  loop: start=0, step=1, limit=4
  $region2: #{discriminator_forward.3} parent=0 // loop_pre_header
    _
  $region3: #{discriminator_forward.3} parent=0 // loop_header
    %s10 = sphi 0, %s14
    %p11 = scmp.ge.s32.totalorder %s10, 4
    %s20 = sphi 0, %s22
    %s23 = sphi 0, %s20
    %s24 = sphi 0, %s23
    %s40 = sphi 0, %s24
    %s44 = sphi 0, %s44
    %s46 = sphi 0, %s44
    %s47 = sphi 0, %s46
    %s61 = sphi 0, %s47
    %s65 = sphi 0, %s65
    %s67 = sphi 0, %s65
    %s68 = sphi 0, %s67
    %s82 = sphi 0, %s68
    %s86 = sphi 0, %s86
    %s88 = sphi 0, %s86
    %s89 = sphi 0, %s88
    %s103 = sphi 0, %s89
    %s109 = sphi 0, %s111
    %s112 = sphi 0, %s109
    %s113 = sphi 0, %s112
    %s129 = sphi 0, %s113
  $region4: #{discriminator_forward.3} parent=0 // loop_header_branch
    %13 = sbr.rel (%p11) target = $region8
  $region5: #{discriminator_forward.3} parent=0 // loop_body
    %s15 = ssub.s32 %s10, 1
    %s16 = ssub.s32 %s10, 2
    %s17 = sadd.s32 %s10, 1
    %s18 = ssub.s32 %s10, %s17
    %p19 = scmp.eq.s32.totalorder %s18, 0
    %s21 = sadd.s32 %s20, 1
    %s22 = scalar_select %p19, %s20, %s21
    %p25 = pneg %p19
    %p26 = scmp.eq.s32.totalorder %s10, 1
    %p27 = por %p25, %p26
    %p28 = scmp.ne.s32.totalorder %s20, %s23
    %p29 = scmp.eq.s32.totalorder %s10, 0
    %p30 = por %p28, %p29
    %p31 = scmp.ne.s32.totalorder %s20, %s23
    %p32 = scmp.eq.s32.totalorder %s15, 1
    %p33 = por %p31, %p32
    %p34 = scmp.ne.s32.totalorder %s23, %s24
    %p35 = scmp.eq.s32.totalorder %s15, 0
    %p36 = por %p34, %p35
    %p37 = scmp.ne.s32.totalorder %s23, %s24
    %p38 = scmp.eq.s32.totalorder %s16, 1
    %p39 = por %p37, %p38
    %p41 = scmp.ne.s32.totalorder %s24, %s40
    %p42 = scmp.eq.s32.totalorder %s16, 0
    %p43 = por %p41, %p42
    %s45 = sadd.s32 %s44, 1
    %p48 = scmp.eq.s32.totalorder %s10, 1
    %p49 = scmp.ne.s32.totalorder %s44, %s46
    %p50 = scmp.eq.s32.totalorder %s10, 0
    %p51 = por %p49, %p50
    %p52 = scmp.ne.s32.totalorder %s44, %s46
    %p53 = scmp.eq.s32.totalorder %s15, 1
    %p54 = por %p52, %p53
    %p55 = scmp.ne.s32.totalorder %s46, %s47
    %p56 = scmp.eq.s32.totalorder %s15, 0
    %p57 = por %p55, %p56
    %p58 = scmp.ne.s32.totalorder %s46, %s47
    %p59 = scmp.eq.s32.totalorder %s16, 1
    %p60 = por %p58, %p59
    %p62 = scmp.ne.s32.totalorder %s47, %s61
    %p63 = scmp.eq.s32.totalorder %s16, 0
    %p64 = por %p62, %p63
    %s66 = sadd.s32 %s65, 1
    %p69 = scmp.eq.s32.totalorder %s10, 1
    %p70 = scmp.ne.s32.totalorder %s65, %s67
    %p71 = scmp.eq.s32.totalorder %s10, 0
    %p72 = por %p70, %p71
    %p73 = scmp.ne.s32.totalorder %s65, %s67
    %p74 = scmp.eq.s32.totalorder %s15, 1
    %p75 = por %p73, %p74
    %p76 = scmp.ne.s32.totalorder %s67, %s68
    %p77 = scmp.eq.s32.totalorder %s15, 0
    %p78 = por %p76, %p77
    %p79 = scmp.ne.s32.totalorder %s67, %s68
    %p80 = scmp.eq.s32.totalorder %s16, 1
    %p81 = por %p79, %p80
    %p83 = scmp.ne.s32.totalorder %s68, %s82
    %p84 = scmp.eq.s32.totalorder %s16, 0
    %p85 = por %p83, %p84
    %s87 = sadd.s32 %s86, 1
    %p90 = scmp.eq.s32.totalorder %s10, 1
    %p91 = scmp.ne.s32.totalorder %s86, %s88
    %p92 = scmp.eq.s32.totalorder %s10, 0
    %p93 = por %p91, %p92
    %p94 = scmp.ne.s32.totalorder %s86, %s88
    %p95 = scmp.eq.s32.totalorder %s15, 1
    %p96 = por %p94, %p95
    %p97 = scmp.ne.s32.totalorder %s88, %s89
    %p98 = scmp.eq.s32.totalorder %s15, 0
    %p99 = por %p97, %p98
    %p100 = scmp.ne.s32.totalorder %s88, %s89
    %p101 = scmp.eq.s32.totalorder %s16, 1
    %p102 = por %p100, %p101
    %p104 = scmp.ne.s32.totalorder %s89, %s103
    %p105 = scmp.eq.s32.totalorder %s16, 0
    %p106 = por %p104, %p105
    %s107 = ssub.s32 %s10, %s17
    %p108 = scmp.eq.s32.totalorder %s107, 0
    %s110 = sadd.s32 %s109, 1
    %s111 = scalar_select %p108, %s109, %s110
    %p114 = pneg %p108
    %p115 = scmp.eq.s32.totalorder %s10, 1
    %p116 = por %p114, %p115
    %p117 = scmp.ne.s32.totalorder %s109, %s112
    %p118 = scmp.eq.s32.totalorder %s10, 0
    %p119 = por %p117, %p118
    %p120 = scmp.ne.s32.totalorder %s109, %s112
    %p121 = scmp.eq.s32.totalorder %s15, 1
    %p122 = por %p120, %p121
    %p123 = scmp.ne.s32.totalorder %s112, %s113
    %p124 = scmp.eq.s32.totalorder %s15, 0
    %p125 = por %p123, %p124
    %p126 = scmp.ne.s32.totalorder %s112, %s113
    %p127 = scmp.eq.s32.totalorder %s16, 1
    %p128 = por %p126, %p127
    %p130 = scmp.ne.s32.totalorder %s113, %s129
    %p131 = scmp.eq.s32.totalorder %s16, 0
    %p132 = por %p130, %p131
    %p133 = scmp.le.s32.totalorder 1, %s10
    %p134 = scmp.lt.s32.totalorder %s10, 3
    %p135 = pnand %p133, %p134
    %p136 = pneg %p135
    // Predicated region
    $region9: #{discriminator_forward.3} parent=5 // pred_check
      _
    $region10: #{discriminator_forward.3} parent=5 // pred_check_branch
      %138 = sbr.rel (%p135) target = $region12
    $region11: #{discriminator_forward.3} parent=5 // pred_region
      %s139 = ssub.s32 %s10, 1
      // Predicated region
      $region13: #{discriminator_forward.3} parent=11 // pred_check
        %p140 = pneg %p57
      $region14: #{discriminator_forward.3} parent=11 // pred_check_branch
        %142 = sbr.rel (%p140) target = $region16
      $region15: #{discriminator_forward.3} parent=11 // pred_region
        _
      $region16: #{discriminator_forward.3} parent=11 // pred_fallthru
        _
      // Predicated region
      $region17: #{discriminator_forward.3} parent=11 // pred_check
        %p143 = pneg %p78
      $region18: #{discriminator_forward.3} parent=11 // pred_check_branch
        %145 = sbr.rel (%p143) target = $region20
      $region19: #{discriminator_forward.3} parent=11 // pred_region
        _
      $region20: #{discriminator_forward.3} parent=11 // pred_fallthru
        _
      // Predicated region
      $region21: #{discriminator_forward.3} parent=11 // pred_check
        %p146 = pneg %p99
      $region22: #{discriminator_forward.3} parent=11 // pred_check_branch
        %148 = sbr.rel (%p146) target = $region24
      $region23: #{discriminator_forward.3} parent=11 // pred_region
        _
      $region24: #{discriminator_forward.3} parent=11 // pred_fallthru
        _
    $region12: #{discriminator_forward.3} parent=5 // pred_fallthru
      _
    %p149 = scmp.lt.s32.totalorder %s10, 2
    // Predicated region
    $region25: #{discriminator_forward.3} parent=5 // pred_check
      %p150 = pneg %p149
    $region26: #{discriminator_forward.3} parent=5 // pred_check_branch
      %152 = sbr.rel (%p150) target = $region28
    $region27: #{discriminator_forward.3} parent=5 // pred_region
      // Predicated region
      $region29: #{discriminator_forward.3} parent=27 // pred_check
        %p153 = pneg %p30
      $region30: #{discriminator_forward.3} parent=27 // pred_check_branch
        %155 = sbr.rel (%p153) target = $region32
      $region31: #{discriminator_forward.3} parent=27 // pred_region
        %p156 = scmp.lt.s32.totalorder %s10, 1
        %s157 = scalar_select %p156, %s10, 1
        %s158 = smul.addr %s157, 32
        %s159 = smul.addr %s158, 4
        %s160 = scalar_lea.vmem %s0, %s159
      $region32: #{discriminator_forward.3} parent=27 // pred_fallthru
        _
    $region28: #{discriminator_forward.3} parent=5 // pred_fallthru
      _
    %p161 = scmp.le.s32.totalorder 1, %s10
    %p162 = scmp.lt.s32.totalorder %s10, 3
    %p163 = pnand %p161, %p162
    %p164 = pneg %p163
    // Predicated region
    $region33: #{discriminator_forward.3} parent=5 // pred_check
      _
    $region34: #{discriminator_forward.3} parent=5 // pred_check_branch
      %166 = sbr.rel (%p163) target = $region36
    $region35: #{discriminator_forward.3} parent=5 // pred_region
      %s167 = ssub.s32 %s10, 1
      %p168 = scmp.lt.s32.totalorder %s15, 1
      %s169 = scalar_select %p168, %s15, 1
      %s170 = smul.addr %s169, 32
      %s171 = smul.addr %s170, 4
      %s172 = scalar_lea.vmem %s0, %s171
      %p173 = pneg %p36
      %p174 = pneg %p33
      %p175 = pneg %p57
      %p176 = pneg %p54
      %p177 = pneg %p78
      %p178 = pneg %p75
      %p179 = pneg %p99
      %p180 = pneg %p96
      %p181 = pneg %p125
      %p182 = pneg %p122
      %p183 = scmp.lt.s32.totalorder %s15, 1
      %s184 = scalar_select %p183, %s15, 1
      %s185 = smul.addr %s184, 8
      %s186 = smul.addr %s185, 4
      %s187 = scalar_lea.vmem %s4, %s186
      %p188 = scmp.lt.s32.totalorder %s15, 1
      %s189 = scalar_select %p188, %s15, 1
      %s190 = smul.addr %s189, 32
      %s191 = smul.addr %s190, 4
      %s192 = scalar_lea.vmem %s0, %s191
      %p193 = scmp.lt.s32.totalorder %s15, 1
      %s194 = scalar_select %p193, %s15, 1
      %s195 = smul.addr %s194, 8
      %s196 = smul.addr %s195, 4
      %s197 = scalar_lea.vmem %s4, %s196
      %v199 = vld [vmem:[%s192] sm:$0xf]
      %v200 = vld [vmem:[%s192 + $0x4] sm:$0xf]
      %v201 = vld [vmem:[%s192 + $0x8] sm:$0xf]
      %v202 = vld [vmem:[%s192 + $0xc] sm:$0xf]
      %v203 = vld [vmem:[%s192 + $0x10] sm:$0xf]
      %v204 = vld [vmem:[%s192 + $0x14] sm:$0xf]
      %v205 = vld [vmem:[%s192 + $0x18] sm:$0xf]
      %v206 = vld [vmem:[%s192 + $0x1c] sm:$0xf]
      %v207 = vld [vmem:[%s192 + $0x20] sm:$0xf]
      %v208 = vld [vmem:[%s192 + $0x24] sm:$0xf]
      %v209 = vld [vmem:[%s192 + $0x28] sm:$0xf]
      %v210 = vld [vmem:[%s192 + $0x2c] sm:$0xf]
      %v211 = vld [vmem:[%s192 + $0x30] sm:$0xf]
      %v212 = vld [vmem:[%s192 + $0x34] sm:$0xf]
      %v213 = vld [vmem:[%s192 + $0x38] sm:$0xf]
      %v214 = vld [vmem:[%s192 + $0x3c] sm:$0xf]
      %v215 = vld [vmem:[%s192 + $0x40] sm:$0xf]
      %v216 = vld [vmem:[%s192 + $0x44] sm:$0xf]
      %v217 = vld [vmem:[%s192 + $0x48] sm:$0xf]
      %v218 = vld [vmem:[%s192 + $0x4c] sm:$0xf]
      %v219 = vld [vmem:[%s192 + $0x50] sm:$0xf]
      %v220 = vld [vmem:[%s192 + $0x54] sm:$0xf]
      %v221 = vld [vmem:[%s192 + $0x58] sm:$0xf]
      %v222 = vld [vmem:[%s192 + $0x5c] sm:$0xf]
      %v223 = vld [vmem:[%s192 + $0x60] sm:$0xf]
      %v224 = vld [vmem:[%s192 + $0x64] sm:$0xf]
      %v225 = vld [vmem:[%s192 + $0x68] sm:$0xf]
      %v226 = vld [vmem:[%s192 + $0x6c] sm:$0xf]
      %v227 = vld [vmem:[%s192 + $0x70] sm:$0xf]
      %v228 = vld [vmem:[%s192 + $0x74] sm:$0xf]
      %v229 = vld [vmem:[%s192 + $0x78] sm:$0xf]
      %v230 = vld [vmem:[%s192 + $0x7c] sm:$0xf]
      %v231 = vld [vmem:[%s1] sm:$0xf]
      %v232 = vld [vmem:[%s1 + $0x4] sm:$0xf]
      %v233 = vld [vmem:[%s1 + $0x8] sm:$0xf]
      %v234 = vld [vmem:[%s1 + $0xc] sm:$0xf]
      %v235 = vld [vmem:[%s1 + $0x10] sm:$0x3]
      %v236 = vld [vmem:[%s2] sm:$0x1]
      %v238 = vlaneseq
      %v239 = vshrl.u32 %v238, 7
      %v240 = vsub.s32 0, %v239
      %v241 = vrot.slane %v236, %v240
      %v275 = vunpack.c.l.b16 %v199
      %v276 = vunpack.c.l.b16 %v200
      %v277 = vunpack.c.l.b16 %v201
      %v278 = vunpack.c.l.b16 %v202
      %v279 = vunpack.c.l.b16 %v203
      %v280 = vunpack.c.l.b16 %v204
      %v281 = vunpack.c.l.b16 %v205
      %v282 = vunpack.c.l.b16 %v206
      %v283 = vunpack.c.l.b16 %v207
      %v284 = vunpack.c.l.b16 %v208
      %v285 = vunpack.c.l.b16 %v209
      %v286 = vunpack.c.l.b16 %v210
      %v287 = vunpack.c.l.b16 %v211
      %v288 = vunpack.c.l.b16 %v212
      %v289 = vunpack.c.l.b16 %v213
      %v290 = vunpack.c.l.b16 %v214
      %v291 = vunpack.c.l.b16 %v215
      %v292 = vunpack.c.l.b16 %v216
      %v293 = vunpack.c.l.b16 %v217
      %v294 = vunpack.c.l.b16 %v218
      %v295 = vunpack.c.l.b16 %v219
      %v296 = vunpack.c.l.b16 %v220
      %v297 = vunpack.c.l.b16 %v221
      %v298 = vunpack.c.l.b16 %v222
      %v299 = vunpack.c.l.b16 %v223
      %v300 = vunpack.c.l.b16 %v224
      %v301 = vunpack.c.l.b16 %v225
      %v302 = vunpack.c.l.b16 %v226
      %v303 = vunpack.c.l.b16 %v227
      %v304 = vunpack.c.l.b16 %v228
      %v305 = vunpack.c.l.b16 %v229
      %v306 = vunpack.c.l.b16 %v230
      %v307 = vpack.c.b16 %v276, %v275
      %v308 = vpack.c.b16 %v278, %v277
      %v309 = vpack.c.b16 %v280, %v279
      %v310 = vpack.c.b16 %v282, %v281
      %v311 = vpack.c.b16 %v284, %v283
      %v312 = vpack.c.b16 %v286, %v285
      %v313 = vpack.c.b16 %v288, %v287
      %v314 = vpack.c.b16 %v290, %v289
      %v315 = vpack.c.b16 %v292, %v291
      %v316 = vpack.c.b16 %v294, %v293
      %v317 = vpack.c.b16 %v296, %v295
      %v318 = vpack.c.b16 %v298, %v297
      %v319 = vpack.c.b16 %v300, %v299
      %v320 = vpack.c.b16 %v302, %v301
      %v321 = vpack.c.b16 %v304, %v303
      %v322 = vpack.c.b16 %v306, %v305
      %v328 = vunpack.c.l.b16 %v231
      %v329 = vunpack.c.l.b16 %v232
      %v330 = vunpack.c.l.b16 %v233
      %v331 = vunpack.c.l.b16 %v234
      %v332 = vunpack.c.l.b16 %v235
      %v333 = vpack.c.b16 %v329, %v328
      %v334 = vpack.c.b16 %v331, %v330
      %v335 = vpack.c.b16 %v332, %v332
      %vm338 = vcmask 293888
      %v340 = vsel %vm338, %v307, 0
      %v343 = vsel %vm338, %v308, 0
      %v346 = vsel %vm338, %v309, 0
      %v349 = vsel %vm338, %v310, 0
      %v352 = vsel %vm338, %v311, 0
      %v355 = vsel %vm338, %v312, 0
      %v358 = vsel %vm338, %v313, 0
      %v361 = vsel %vm338, %v314, 0
      %v364 = vsel %vm338, %v315, 0
      %v367 = vsel %vm338, %v316, 0
      %v370 = vsel %vm338, %v317, 0
      %v373 = vsel %vm338, %v318, 0
      %v376 = vsel %vm338, %v319, 0
      %v379 = vsel %vm338, %v320, 0
      %v382 = vsel %vm338, %v321, 0
      %v385 = vsel %vm338, %v322, 0
      %vm387 = vcmask 1041408
      %v389 = vsel %vm387, %v335, 0
      %391 = vmatprep.subr.bf16.mxu0 0
      %392 = vmatpush1.bf16.msra.mxu0 0
      %393 = vmatprep.subr.bf16.mxu0 0
      %394 = vmatpush1.bf16.msra.mxu0 0
      %395 = vmatprep.subr.bf16.mxu0 0
      %396 = vmatpush1.bf16.msra.mxu0 0
      %397 = vmatprep.subr.bf16.mxu0 0
      %398 = vmatpush1.bf16.msra.mxu0 0
      %399 = vmatprep.subr.bf16.mxu0 0
      %400 = vmatpush1.bf16.msra.mxu0 0
      %401 = vmatprep.subr.bf16.mxu0 0
      %402 = vmatpush1.bf16.msra.mxu0 %v389
      %403 = vmatprep.subr.bf16.mxu0 0
      %404 = vmatpush1.bf16.msra.mxu0 %v334
      %405 = vmatprep.subr.bf16.mxu0 0
      %406 = vmatpush1.bf16.msra.mxu0 %v333
      %407 = vmatprep.subr.bf16.mxu0 0
      %408 = vmatpush2.bf16.msra.mxu0 0
      %409 = vmatprep.subr.bf16.mxu0 0
      %410 = vmatpush2.bf16.msra.mxu0 0
      %411 = vmatprep.subr.bf16.mxu0 0
      %412 = vmatpush2.bf16.msra.mxu0 0
      %413 = vmatprep.subr.bf16.mxu0 0
      %414 = vmatpush2.bf16.msra.mxu0 0
      %415 = vmatprep.subr.bf16.mxu0 0
      %416 = vmatpush2.bf16.msra.mxu0 0
      %417 = vmatprep.subr.bf16.mxu0 0
      %418 = vmatpush2.bf16.msra.mxu0 0
      %419 = vmatprep.subr.bf16.mxu0 0
      %420 = vmatpush2.bf16.msra.mxu0 0
      %421 = vmatprep.subr.bf16.mxu0 0
      %422 = vmatpush2.bf16.msra.mxu0 0
      %423 = vmatprep.mubr.bf16.mxu0 0
      %424 = vmatmul.mubr.bf16.gmra.mxu0 %v340
      %v425 = vpop.f32.mrf.mxu0
      %v426 = vadd.f32 %v241, %v425
      %v427 = vpop.f32.mrf.mxu0
      %v428 = vpop.f32.mrf.mxu0
      %v429 = vadd.f32 %v241, %v428
      %v430 = vpop.f32.mrf.mxu0
      %431 = vmatprep.mubr.bf16.mxu0 0
      %432 = vmatmul.mubr.bf16.gmra.mxu0 %v343
      %v433 = vpop.f32.mrf.mxu0
      %v434 = vadd.f32 %v241, %v433
      %v435 = vpop.f32.mrf.mxu0
      %v436 = vpop.f32.mrf.mxu0
      %v437 = vadd.f32 %v241, %v436
      %v438 = vpop.f32.mrf.mxu0
      %439 = vmatprep.mubr.bf16.mxu0 0
      %440 = vmatmul.mubr.bf16.gmra.mxu0 %v346
      %v441 = vpop.f32.mrf.mxu0
      %v442 = vadd.f32 %v241, %v441
      %v443 = vpop.f32.mrf.mxu0
      %v444 = vpop.f32.mrf.mxu0
      %v445 = vadd.f32 %v241, %v444
      %v446 = vpop.f32.mrf.mxu0
      %447 = vmatprep.mubr.bf16.mxu0 0
      %448 = vmatmul.mubr.bf16.gmra.mxu0 %v349
      %v449 = vpop.f32.mrf.mxu0
      %v450 = vadd.f32 %v241, %v449
      %v451 = vpop.f32.mrf.mxu0
      %v452 = vpop.f32.mrf.mxu0
      %v453 = vadd.f32 %v241, %v452
      %v454 = vpop.f32.mrf.mxu0
      %455 = vmatprep.mubr.bf16.mxu0 0
      %456 = vmatmul.mubr.bf16.gmra.mxu0 %v352
      %v457 = vpop.f32.mrf.mxu0
      %v458 = vadd.f32 %v241, %v457
      %v459 = vpop.f32.mrf.mxu0
      %v460 = vpop.f32.mrf.mxu0
      %v461 = vadd.f32 %v241, %v460
      %v462 = vpop.f32.mrf.mxu0
      %463 = vmatprep.mubr.bf16.mxu0 0
      %464 = vmatmul.mubr.bf16.gmra.mxu0 %v355
      %v465 = vpop.f32.mrf.mxu0
      %v466 = vadd.f32 %v241, %v465
      %v467 = vpop.f32.mrf.mxu0
      %v468 = vpop.f32.mrf.mxu0
      %v469 = vadd.f32 %v241, %v468
      %v470 = vpop.f32.mrf.mxu0
      %471 = vmatprep.mubr.bf16.mxu0 0
      %472 = vmatmul.mubr.bf16.gmra.mxu0 %v358
      %v473 = vpop.f32.mrf.mxu0
      %v474 = vadd.f32 %v241, %v473
      %v475 = vpop.f32.mrf.mxu0
      %v476 = vpop.f32.mrf.mxu0
      %v477 = vadd.f32 %v241, %v476
      %v478 = vpop.f32.mrf.mxu0
      %479 = vmatprep.mubr.bf16.mxu0 0
      %480 = vmatmul.mubr.bf16.gmra.mxu0 %v361
      %v481 = vpop.f32.mrf.mxu0
      %v482 = vadd.f32 %v241, %v481
      %v483 = vpop.f32.mrf.mxu0
      %v484 = vpop.f32.mrf.mxu0
      %v485 = vadd.f32 %v241, %v484
      %v486 = vpop.f32.mrf.mxu0
      %487 = vmatprep.mubr.bf16.mxu0 0
      %488 = vmatmul.mubr.bf16.gmra.mxu0 %v364
      %v489 = vpop.f32.mrf.mxu0
      %v490 = vadd.f32 %v241, %v489
      %v491 = vpop.f32.mrf.mxu0
      %v492 = vpop.f32.mrf.mxu0
      %v493 = vadd.f32 %v241, %v492
      %v494 = vpop.f32.mrf.mxu0
      %495 = vmatprep.mubr.bf16.mxu0 0
      %496 = vmatmul.mubr.bf16.gmra.mxu0 %v367
      %v497 = vpop.f32.mrf.mxu0
      %v498 = vadd.f32 %v241, %v497
      %v499 = vpop.f32.mrf.mxu0
      %v500 = vpop.f32.mrf.mxu0
      %v501 = vadd.f32 %v241, %v500
      %v502 = vpop.f32.mrf.mxu0
      %503 = vmatprep.mubr.bf16.mxu0 0
      %504 = vmatmul.mubr.bf16.gmra.mxu0 %v370
      %v505 = vpop.f32.mrf.mxu0
      %v506 = vadd.f32 %v241, %v505
      %v507 = vpop.f32.mrf.mxu0
      %v508 = vpop.f32.mrf.mxu0
      %v509 = vadd.f32 %v241, %v508
      %v510 = vpop.f32.mrf.mxu0
      %511 = vmatprep.mubr.bf16.mxu0 0
      %512 = vmatmul.mubr.bf16.gmra.mxu0 %v373
      %v513 = vpop.f32.mrf.mxu0
      %v514 = vadd.f32 %v241, %v513
      %v515 = vpop.f32.mrf.mxu0
      %v516 = vpop.f32.mrf.mxu0
      %v517 = vadd.f32 %v241, %v516
      %v518 = vpop.f32.mrf.mxu0
      %519 = vmatprep.mubr.bf16.mxu0 0
      %520 = vmatmul.mubr.bf16.gmra.mxu0 %v376
      %v521 = vpop.f32.mrf.mxu0
      %v522 = vadd.f32 %v241, %v521
      %v523 = vpop.f32.mrf.mxu0
      %v524 = vpop.f32.mrf.mxu0
      %v525 = vadd.f32 %v241, %v524
      %v526 = vpop.f32.mrf.mxu0
      %527 = vmatprep.mubr.bf16.mxu0 0
      %528 = vmatmul.mubr.bf16.gmra.mxu0 %v379
      %v529 = vpop.f32.mrf.mxu0
      %v530 = vadd.f32 %v241, %v529
      %v531 = vpop.f32.mrf.mxu0
      %v532 = vpop.f32.mrf.mxu0
      %v533 = vadd.f32 %v241, %v532
      %v534 = vpop.f32.mrf.mxu0
      %535 = vmatprep.mubr.bf16.mxu0 0
      %536 = vmatmul.mubr.bf16.gmra.mxu0 %v382
      %v537 = vpop.f32.mrf.mxu0
      %v538 = vadd.f32 %v241, %v537
      %v539 = vpop.f32.mrf.mxu0
      %v540 = vpop.f32.mrf.mxu0
      %v541 = vadd.f32 %v241, %v540
      %v542 = vpop.f32.mrf.mxu0
      %543 = vmatprep.mubr.bf16.mxu0 0
      %544 = vmatmul.mubr.bf16.gmra.mxu0 %v385
      %v545 = vpop.f32.mrf.mxu0
      %v546 = vadd.f32 %v241, %v545
      %v547 = vpop.f32.mrf.mxu0
      %v548 = vpop.f32.mrf.mxu0
      %v549 = vadd.f32 %v241, %v548
      %v550 = vpop.f32.mrf.mxu0
      %551 = vdwg.mxu0
      %v552 = vmax.f32 %v426, 0.0
      %v553 = vmax.f32 %v429, 0.0
      %v554 = vmax.f32 %v434, 0.0
      %v555 = vmax.f32 %v437, 0.0
      %v556 = vmax.f32 %v442, 0.0
      %v557 = vmax.f32 %v445, 0.0
      %v558 = vmax.f32 %v450, 0.0
      %v559 = vmax.f32 %v453, 0.0
      %v560 = vmax.f32 %v458, 0.0
      %v561 = vmax.f32 %v461, 0.0
      %v562 = vmax.f32 %v466, 0.0
      %v563 = vmax.f32 %v469, 0.0
      %v564 = vmax.f32 %v474, 0.0
      %v565 = vmax.f32 %v477, 0.0
      %v566 = vmax.f32 %v482, 0.0
      %v567 = vmax.f32 %v485, 0.0
      %v568 = vmax.f32 %v490, 0.0
      %v569 = vmax.f32 %v493, 0.0
      %v570 = vmax.f32 %v498, 0.0
      %v571 = vmax.f32 %v501, 0.0
      %v572 = vmax.f32 %v506, 0.0
      %v573 = vmax.f32 %v509, 0.0
      %v574 = vmax.f32 %v514, 0.0
      %v575 = vmax.f32 %v517, 0.0
      %v576 = vmax.f32 %v522, 0.0
      %v577 = vmax.f32 %v525, 0.0
      %v578 = vmax.f32 %v530, 0.0
      %v579 = vmax.f32 %v533, 0.0
      %v580 = vmax.f32 %v538, 0.0
      %v581 = vmax.f32 %v541, 0.0
      %v582 = vmax.f32 %v546, 0.0
      %v583 = vmax.f32 %v549, 0.0
      %v584 = vld [vmem:[%s3] sm:$0xff]
      %v585 = vld [vmem:[%s3 + $0x8] sm:$0xff]
      %v586 = vld [vmem:[%s3 + $0x10] sm:$0xff]
      %v587 = vld [vmem:[%s3 + $0x18] sm:$0xff]
      %v588 = vld [vmem:[%s3 + $0x20] sm:$0xff]
      %v589 = vld [vmem:[%s3 + $0x28] sm:$0xff]
      %v590 = vld [vmem:[%s3 + $0x30] sm:$0xff]
      %v591 = vld [vmem:[%s3 + $0x38] sm:$0xff]
      %v592 = vpack.c.bf16 %v553, %v552
      %v593 = vpack.c.bf16 %v555, %v554
      %v594 = vpack.c.bf16 %v557, %v556
      %v595 = vpack.c.bf16 %v559, %v558
      %v596 = vpack.c.bf16 %v561, %v560
      %v597 = vpack.c.bf16 %v563, %v562
      %v598 = vpack.c.bf16 %v565, %v564
      %v599 = vpack.c.bf16 %v567, %v566
      %v600 = vpack.c.bf16 %v569, %v568
      %v601 = vpack.c.bf16 %v571, %v570
      %v602 = vpack.c.bf16 %v573, %v572
      %v603 = vpack.c.bf16 %v575, %v574
      %v604 = vpack.c.bf16 %v577, %v576
      %v605 = vpack.c.bf16 %v579, %v578
      %v606 = vpack.c.bf16 %v581, %v580
      %v607 = vpack.c.bf16 %v583, %v582
      %v616 = vunpack.c.l.b16 %v584
      %v617 = vunpack.c.h.b16 %v584
      %v618 = vunpack.c.l.b16 %v585
      %v619 = vunpack.c.h.b16 %v585
      %v620 = vunpack.c.l.b16 %v586
      %v621 = vunpack.c.h.b16 %v586
      %v622 = vunpack.c.l.b16 %v587
      %v623 = vunpack.c.h.b16 %v587
      %v624 = vunpack.c.l.b16 %v588
      %v625 = vunpack.c.h.b16 %v588
      %v626 = vunpack.c.l.b16 %v589
      %v627 = vunpack.c.h.b16 %v589
      %v628 = vunpack.c.l.b16 %v590
      %v629 = vunpack.c.h.b16 %v590
      %v630 = vunpack.c.l.b16 %v591
      %v631 = vunpack.c.h.b16 %v591
      %v632 = vpack.c.b16 %v618, %v616
      %v633 = vpack.c.b16 %v619, %v617
      %v634 = vpack.c.b16 %v622, %v620
      %v635 = vpack.c.b16 %v623, %v621
      %v636 = vpack.c.b16 %v626, %v624
      %v637 = vpack.c.b16 %v627, %v625
      %v638 = vpack.c.b16 %v630, %v628
      %v639 = vpack.c.b16 %v631, %v629
      %648 = vmatprep.subr.bf16.mxu0 0
      %649 = vmatpush1.bf16.msra.mxu0 %v599
      %650 = vmatprep.subr.bf16.mxu0 0
      %651 = vmatpush1.bf16.msra.mxu0 %v598
      %652 = vmatprep.subr.bf16.mxu0 0
      %653 = vmatpush1.bf16.msra.mxu0 %v597
      %654 = vmatprep.subr.bf16.mxu0 0
      %655 = vmatpush1.bf16.msra.mxu0 %v596
      %656 = vmatprep.subr.bf16.mxu0 0
      %657 = vmatpush1.bf16.msra.mxu0 %v595
      %658 = vmatprep.subr.bf16.mxu0 0
      %659 = vmatpush1.bf16.msra.mxu0 %v594
      %660 = vmatprep.subr.bf16.mxu0 0
      %661 = vmatpush1.bf16.msra.mxu0 %v593
      %662 = vmatprep.subr.bf16.mxu0 0
      %663 = vmatpush1.bf16.msra.mxu0 %v592
      %664 = vmatprep.subr.bf16.mxu0 0
      %665 = vmatpush2.bf16.msra.mxu0 %v607
      %666 = vmatprep.subr.bf16.mxu0 0
      %667 = vmatpush2.bf16.msra.mxu0 %v606
      %668 = vmatprep.subr.bf16.mxu0 0
      %669 = vmatpush2.bf16.msra.mxu0 %v605
      %670 = vmatprep.subr.bf16.mxu0 0
      %671 = vmatpush2.bf16.msra.mxu0 %v604
      %672 = vmatprep.subr.bf16.mxu0 0
      %673 = vmatpush2.bf16.msra.mxu0 %v603
      %674 = vmatprep.subr.bf16.mxu0 0
      %675 = vmatpush2.bf16.msra.mxu0 %v602
      %676 = vmatprep.subr.bf16.mxu0 0
      %677 = vmatpush2.bf16.msra.mxu0 %v601
      %678 = vmatprep.subr.bf16.mxu0 0
      %679 = vmatpush2.bf16.msra.mxu0 %v600
      %680 = vmatprep.mubr.bf16.mxu0 %v633
      %681 = vmatmul.mubr.bf16.gmra.mxu0 %v632
      %v682 = vpop.f32.mrf.mxu0
      %v683 = vadd.f32 0.0, %v682
      %v684 = vpop.f32.mrf.mxu0
      %v685 = vpop.f32.mrf.mxu0
      %v686 = vadd.f32 0.0, %v685
      %v687 = vpop.f32.mrf.mxu0
      %688 = vmatprep.mubr.bf16.mxu0 %v635
      %689 = vmatmul.mubr.bf16.gmra.mxu0 %v634
      %v690 = vpop.f32.mrf.mxu0
      %v691 = vadd.f32 0.0, %v690
      %v692 = vpop.f32.mrf.mxu0
      %v693 = vpop.f32.mrf.mxu0
      %v694 = vadd.f32 0.0, %v693
      %v695 = vpop.f32.mrf.mxu0
      %696 = vmatprep.mubr.bf16.mxu0 %v637
      %697 = vmatmul.mubr.bf16.gmra.mxu0 %v636
      %v698 = vpop.f32.mrf.mxu0
      %v699 = vadd.f32 0.0, %v698
      %v700 = vpop.f32.mrf.mxu0
      %v701 = vpop.f32.mrf.mxu0
      %v702 = vadd.f32 0.0, %v701
      %v703 = vpop.f32.mrf.mxu0
      %704 = vmatprep.mubr.bf16.mxu0 %v639
      %705 = vmatmul.mubr.bf16.gmra.mxu0 %v638
      %v706 = vpop.f32.mrf.mxu0
      %v707 = vadd.f32 0.0, %v706
      %v708 = vpop.f32.mrf.mxu0
      %v709 = vpop.f32.mrf.mxu0
      %v710 = vadd.f32 0.0, %v709
      %v711 = vpop.f32.mrf.mxu0
      %712 = vdwg.mxu0
      %v713 = vpack.c.bf16 %v686, %v683
      %v714 = vpack.c.bf16 %v694, %v691
      %v715 = vpack.c.bf16 %v702, %v699
      %v716 = vpack.c.bf16 %v710, %v707
      %v721 = vunpack.c.l.b16 %v713
      %v722 = vunpack.c.h.b16 %v713
      %v723 = vunpack.c.l.b16 %v714
      %v724 = vunpack.c.h.b16 %v714
      %v725 = vunpack.c.l.b16 %v715
      %v726 = vunpack.c.h.b16 %v715
      %v727 = vunpack.c.l.b16 %v716
      %v728 = vunpack.c.h.b16 %v716
      %v729 = vpack.c.b16 %v721, %v721
      %v730 = vpack.c.b16 %v722, %v722
      %v731 = vpack.c.b16 %v723, %v723
      %v732 = vpack.c.b16 %v724, %v724
      %v733 = vpack.c.b16 %v725, %v725
      %v734 = vpack.c.b16 %v726, %v726
      %v735 = vpack.c.b16 %v727, %v727
      %v736 = vpack.c.b16 %v728, %v728
      %vm745 = vcmask 257024
      %746 = vst.msk [vmem:[%s197] sm:$0xf] %vm745, %v729
      %747 = vst.msk [vmem:[%s197 + $0x4] sm:$0xf] %vm745, %v730
      %748 = vst.msk [vmem:[%s197 + $0x8] sm:$0xf] %vm745, %v731
      %749 = vst.msk [vmem:[%s197 + $0xc] sm:$0xf] %vm745, %v732
      %750 = vst.msk [vmem:[%s197 + $0x10] sm:$0xf] %vm745, %v733
      %751 = vst.msk [vmem:[%s197 + $0x14] sm:$0xf] %vm745, %v734
      %752 = vst.msk [vmem:[%s197 + $0x18] sm:$0xf] %vm745, %v735
      %753 = vst.msk [vmem:[%s197 + $0x1c] sm:$0xf] %vm745, %v736
      %p754 = scmp.lt.s32.totalorder %s15, 1
      %s755 = scalar_select %p754, %s15, 1
      %s756 = smul.addr %s755, 8
      %s757 = smul.addr %s756, 4
      %s758 = scalar_lea.vmem %s4, %s757
      // Predicated region
      $region37: #{discriminator_forward.3} parent=35 // pred_check
        %p759 = pneg %p122
      $region38: #{discriminator_forward.3} parent=35 // pred_check_branch
        %761 = sbr.rel (%p759) target = $region40
      $region39: #{discriminator_forward.3} parent=35 // pred_region
        _
      $region40: #{discriminator_forward.3} parent=35 // pred_fallthru
        _
    $region36: #{discriminator_forward.3} parent=5 // pred_fallthru
      _
    %p762 = scmp.le.s32.totalorder 2, %s10
    // Predicated region
    $region41: #{discriminator_forward.3} parent=5 // pred_check
      %p763 = pneg %p762
    $region42: #{discriminator_forward.3} parent=5 // pred_check_branch
      %765 = sbr.rel (%p763) target = $region44
    $region43: #{discriminator_forward.3} parent=5 // pred_region
      %s766 = ssub.s32 %s10, 2
      // Predicated region
      $region45: #{discriminator_forward.3} parent=43 // pred_check
        %p767 = pneg %p128
      $region46: #{discriminator_forward.3} parent=43 // pred_check_branch
        %769 = sbr.rel (%p767) target = $region48
      $region47: #{discriminator_forward.3} parent=43 // pred_region
        %p770 = scmp.lt.s32.totalorder %s16, 1
        %s771 = scalar_select %p770, %s16, 1
        %s772 = smul.addr %s771, 8
        %s773 = smul.addr %s772, 4
        %s774 = scalar_lea.vmem %s4, %s773
      $region48: #{discriminator_forward.3} parent=43 // pred_fallthru
        _
    $region44: #{discriminator_forward.3} parent=5 // pred_fallthru
      _
  $region6: #{discriminator_forward.3} parent=0 // loop_footer
    %s14 = sadd.s32 1, %s10
  $region7: #{discriminator_forward.3} parent=0 // loop_footer_branch
    %9 = sbr.rel target = $region3
  $region8: #{discriminator_forward.3} parent=0 // loop_exit
    _

// kernel: discriminator_forward.4
$region0: #{discriminator_forward.4}
  #allocation0 [shape = 'u32[]', space=smem, size = 0x4, offset = 0x4, fixed_abs, tag = 'smem constant byte address 0x4 - core index']
  #allocation1 [shape = 'u32[144,128]{1,0:T(1,128)}', space=vmem, size = 0x12000, scoped, tag = 'internal scratch']
  %s0 = inlined_call_operand.vmem [shape: bf16[2,64,288], index: 0, kind: input, shape index: {}]
  %s1 = inlined_call_operand.vmem [shape: bf16[288,64], index: 1, kind: input, shape index: {}]
  %s2 = inlined_call_operand.vmem [shape: f32[1,64], index: 2, kind: input, shape index: {}]
  %s3 = inlined_call_operand.vmem [shape: bf16[16,64], index: 3, kind: input, shape index: {}]
  %s4 = inlined_call_operand.vmem [shape: bf16[2,16,64], index: 4, kind: output, shape index: {}]
  %s5 = sld [smem:[#allocation0]]
  $region49: #{discriminator_forward.4} parent=0
    _
  %s7 = ssub.s32 1, %s5
  %s8 = scalar_select 0, %s7, %s5
  loop: start=0, step=1, limit=4
  $region2: #{discriminator_forward.4} parent=0 // loop_pre_header
    _
  $region3: #{discriminator_forward.4} parent=0 // loop_header
    %s10 = sphi 0, %s14
    %p11 = scmp.ge.s32.totalorder %s10, 4
    %s20 = sphi 0, %s22
    %s23 = sphi 0, %s20
    %s24 = sphi 0, %s23
    %s40 = sphi 0, %s24
    %s44 = sphi 0, %s44
    %s46 = sphi 0, %s44
    %s47 = sphi 0, %s46
    %s61 = sphi 0, %s47
    %s65 = sphi 0, %s65
    %s67 = sphi 0, %s65
    %s68 = sphi 0, %s67
    %s82 = sphi 0, %s68
    %s86 = sphi 0, %s86
    %s88 = sphi 0, %s86
    %s89 = sphi 0, %s88
    %s103 = sphi 0, %s89
    %s109 = sphi 0, %s111
    %s112 = sphi 0, %s109
    %s113 = sphi 0, %s112
    %s129 = sphi 0, %s113
  $region4: #{discriminator_forward.4} parent=0 // loop_header_branch
    %13 = sbr.rel (%p11) target = $region8
  $region5: #{discriminator_forward.4} parent=0 // loop_body
    %s15 = ssub.s32 %s10, 1
    %s16 = ssub.s32 %s10, 2
    %s17 = sadd.s32 %s10, 1
    %s18 = ssub.s32 %s10, %s17
    %p19 = scmp.eq.s32.totalorder %s18, 0
    %s21 = sadd.s32 %s20, 1
    %s22 = scalar_select %p19, %s20, %s21
    %p25 = pneg %p19
    %p26 = scmp.eq.s32.totalorder %s10, 1
    %p27 = por %p25, %p26
    %p28 = scmp.ne.s32.totalorder %s20, %s23
    %p29 = scmp.eq.s32.totalorder %s10, 0
    %p30 = por %p28, %p29
    %p31 = scmp.ne.s32.totalorder %s20, %s23
    %p32 = scmp.eq.s32.totalorder %s15, 1
    %p33 = por %p31, %p32
    %p34 = scmp.ne.s32.totalorder %s23, %s24
    %p35 = scmp.eq.s32.totalorder %s15, 0
    %p36 = por %p34, %p35
    %p37 = scmp.ne.s32.totalorder %s23, %s24
    %p38 = scmp.eq.s32.totalorder %s16, 1
    %p39 = por %p37, %p38
    %p41 = scmp.ne.s32.totalorder %s24, %s40
    %p42 = scmp.eq.s32.totalorder %s16, 0
    %p43 = por %p41, %p42
    %s45 = sadd.s32 %s44, 1
    %p48 = scmp.eq.s32.totalorder %s10, 1
    %p49 = scmp.ne.s32.totalorder %s44, %s46
    %p50 = scmp.eq.s32.totalorder %s10, 0
    %p51 = por %p49, %p50
    %p52 = scmp.ne.s32.totalorder %s44, %s46
    %p53 = scmp.eq.s32.totalorder %s15, 1
    %p54 = por %p52, %p53
    %p55 = scmp.ne.s32.totalorder %s46, %s47
    %p56 = scmp.eq.s32.totalorder %s15, 0
    %p57 = por %p55, %p56
    %p58 = scmp.ne.s32.totalorder %s46, %s47
    %p59 = scmp.eq.s32.totalorder %s16, 1
    %p60 = por %p58, %p59
    %p62 = scmp.ne.s32.totalorder %s47, %s61
    %p63 = scmp.eq.s32.totalorder %s16, 0
    %p64 = por %p62, %p63
    %s66 = sadd.s32 %s65, 1
    %p69 = scmp.eq.s32.totalorder %s10, 1
    %p70 = scmp.ne.s32.totalorder %s65, %s67
    %p71 = scmp.eq.s32.totalorder %s10, 0
    %p72 = por %p70, %p71
    %p73 = scmp.ne.s32.totalorder %s65, %s67
    %p74 = scmp.eq.s32.totalorder %s15, 1
    %p75 = por %p73, %p74
    %p76 = scmp.ne.s32.totalorder %s67, %s68
    %p77 = scmp.eq.s32.totalorder %s15, 0
    %p78 = por %p76, %p77
    %p79 = scmp.ne.s32.totalorder %s67, %s68
    %p80 = scmp.eq.s32.totalorder %s16, 1
    %p81 = por %p79, %p80
    %p83 = scmp.ne.s32.totalorder %s68, %s82
    %p84 = scmp.eq.s32.totalorder %s16, 0
    %p85 = por %p83, %p84
    %s87 = sadd.s32 %s86, 1
    %p90 = scmp.eq.s32.totalorder %s10, 1
    %p91 = scmp.ne.s32.totalorder %s86, %s88
    %p92 = scmp.eq.s32.totalorder %s10, 0
    %p93 = por %p91, %p92
    %p94 = scmp.ne.s32.totalorder %s86, %s88
    %p95 = scmp.eq.s32.totalorder %s15, 1
    %p96 = por %p94, %p95
    %p97 = scmp.ne.s32.totalorder %s88, %s89
    %p98 = scmp.eq.s32.totalorder %s15, 0
    %p99 = por %p97, %p98
    %p100 = scmp.ne.s32.totalorder %s88, %s89
    %p101 = scmp.eq.s32.totalorder %s16, 1
    %p102 = por %p100, %p101
    %p104 = scmp.ne.s32.totalorder %s89, %s103
    %p105 = scmp.eq.s32.totalorder %s16, 0
    %p106 = por %p104, %p105
    %s107 = ssub.s32 %s10, %s17
    %p108 = scmp.eq.s32.totalorder %s107, 0
    %s110 = sadd.s32 %s109, 1
    %s111 = scalar_select %p108, %s109, %s110
    %p114 = pneg %p108
    %p115 = scmp.eq.s32.totalorder %s10, 1
    %p116 = por %p114, %p115
    %p117 = scmp.ne.s32.totalorder %s109, %s112
    %p118 = scmp.eq.s32.totalorder %s10, 0
    %p119 = por %p117, %p118
    %p120 = scmp.ne.s32.totalorder %s109, %s112
    %p121 = scmp.eq.s32.totalorder %s15, 1
    %p122 = por %p120, %p121
    %p123 = scmp.ne.s32.totalorder %s112, %s113
    %p124 = scmp.eq.s32.totalorder %s15, 0
    %p125 = por %p123, %p124
    %p126 = scmp.ne.s32.totalorder %s112, %s113
    %p127 = scmp.eq.s32.totalorder %s16, 1
    %p128 = por %p126, %p127
    %p130 = scmp.ne.s32.totalorder %s113, %s129
    %p131 = scmp.eq.s32.totalorder %s16, 0
    %p132 = por %p130, %p131
    %p133 = scmp.le.s32.totalorder 1, %s10
    %p134 = scmp.lt.s32.totalorder %s10, 3
    %p135 = pnand %p133, %p134
    %p136 = pneg %p135
    // Predicated region
    $region9: #{discriminator_forward.4} parent=5 // pred_check
      _
    $region10: #{discriminator_forward.4} parent=5 // pred_check_branch
      %138 = sbr.rel (%p135) target = $region12
    $region11: #{discriminator_forward.4} parent=5 // pred_region
      %s139 = ssub.s32 %s10, 1
      // Predicated region
      $region13: #{discriminator_forward.4} parent=11 // pred_check
        %p140 = pneg %p57
      $region14: #{discriminator_forward.4} parent=11 // pred_check_branch
        %142 = sbr.rel (%p140) target = $region16
      $region15: #{discriminator_forward.4} parent=11 // pred_region
        _
      $region16: #{discriminator_forward.4} parent=11 // pred_fallthru
        _
      // Predicated region
      $region17: #{discriminator_forward.4} parent=11 // pred_check
        %p143 = pneg %p78
      $region18: #{discriminator_forward.4} parent=11 // pred_check_branch
        %145 = sbr.rel (%p143) target = $region20
      $region19: #{discriminator_forward.4} parent=11 // pred_region
        _
      $region20: #{discriminator_forward.4} parent=11 // pred_fallthru
        _
      // Predicated region
      $region21: #{discriminator_forward.4} parent=11 // pred_check
        %p146 = pneg %p99
      $region22: #{discriminator_forward.4} parent=11 // pred_check_branch
        %148 = sbr.rel (%p146) target = $region24
      $region23: #{discriminator_forward.4} parent=11 // pred_region
        _
      $region24: #{discriminator_forward.4} parent=11 // pred_fallthru
        _
    $region12: #{discriminator_forward.4} parent=5 // pred_fallthru
      _
    %p149 = scmp.lt.s32.totalorder %s10, 2
    // Predicated region
    $region25: #{discriminator_forward.4} parent=5 // pred_check
      %p150 = pneg %p149
    $region26: #{discriminator_forward.4} parent=5 // pred_check_branch
      %152 = sbr.rel (%p150) target = $region28
    $region27: #{discriminator_forward.4} parent=5 // pred_region
      // Predicated region
      $region29: #{discriminator_forward.4} parent=27 // pred_check
        %p153 = pneg %p30
      $region30: #{discriminator_forward.4} parent=27 // pred_check_branch
        %155 = sbr.rel (%p153) target = $region32
      $region31: #{discriminator_forward.4} parent=27 // pred_region
        %p156 = scmp.lt.s32.totalorder %s10, 1
        %s157 = scalar_select %p156, %s10, 1
        %s158 = smul.addr %s157, 24
        %s159 = smul.addr %s158, 4
        %s160 = scalar_lea.vmem %s0, %s159
      $region32: #{discriminator_forward.4} parent=27 // pred_fallthru
        _
    $region28: #{discriminator_forward.4} parent=5 // pred_fallthru
      _
    %p161 = scmp.le.s32.totalorder 1, %s10
    %p162 = scmp.lt.s32.totalorder %s10, 3
    %p163 = pnand %p161, %p162
    %p164 = pneg %p163
    // Predicated region
    $region33: #{discriminator_forward.4} parent=5 // pred_check
      _
    $region34: #{discriminator_forward.4} parent=5 // pred_check_branch
      %166 = sbr.rel (%p163) target = $region36
    $region35: #{discriminator_forward.4} parent=5 // pred_region
      %s167 = ssub.s32 %s10, 1
      %p168 = scmp.lt.s32.totalorder %s15, 1
      %s169 = scalar_select %p168, %s15, 1
      %s170 = smul.addr %s169, 24
      %s171 = smul.addr %s170, 4
      %s172 = scalar_lea.vmem %s0, %s171
      %p173 = pneg %p36
      %p174 = pneg %p33
      %p175 = pneg %p57
      %p176 = pneg %p54
      %p177 = pneg %p78
      %p178 = pneg %p75
      %p179 = pneg %p99
      %p180 = pneg %p96
      %p181 = pneg %p125
      %p182 = pneg %p122
      %p183 = scmp.lt.s32.totalorder %s15, 1
      %s184 = scalar_select %p183, %s15, 1
      %s185 = smul.addr %s184, 2
      %s186 = smul.addr %s185, 4
      %s187 = scalar_lea.vmem %s4, %s186
      %p188 = scmp.lt.s32.totalorder %s15, 1
      %s189 = scalar_select %p188, %s15, 1
      %s190 = smul.addr %s189, 24
      %s191 = smul.addr %s190, 4
      %s192 = scalar_lea.vmem %s0, %s191
      %p193 = scmp.lt.s32.totalorder %s15, 1
      %s194 = scalar_select %p193, %s15, 1
      %s195 = smul.addr %s194, 2
      %s196 = smul.addr %s195, 4
      %s197 = scalar_lea.vmem %s4, %s196
      %v199 = vld [vmem:[%s192] sm:$0xff]
      %v200 = vld [vmem:[%s192 + $0x8] sm:$0xf]
      %v201 = vld [vmem:[%s192 + $0xc] sm:$0xff]
      %v202 = vld [vmem:[%s192 + $0x14] sm:$0xf]
      %v203 = vld [vmem:[%s192 + $0x18] sm:$0xff]
      %v204 = vld [vmem:[%s192 + $0x20] sm:$0xf]
      %v205 = vld [vmem:[%s192 + $0x24] sm:$0xff]
      %v206 = vld [vmem:[%s192 + $0x2c] sm:$0xf]
      %v207 = vld [vmem:[%s192 + $0x30] sm:$0xff]
      %v208 = vld [vmem:[%s192 + $0x38] sm:$0xf]
      %v209 = vld [vmem:[%s192 + $0x3c] sm:$0xff]
      %v210 = vld [vmem:[%s192 + $0x44] sm:$0xf]
      %v211 = vld [vmem:[%s192 + $0x48] sm:$0xff]
      %v212 = vld [vmem:[%s192 + $0x50] sm:$0xf]
      %v213 = vld [vmem:[%s192 + $0x54] sm:$0xff]
      %v214 = vld [vmem:[%s192 + $0x5c] sm:$0xf]
      %v215 = vld [vmem:[%s1] sm:$0xf]
      %v216 = vld [vmem:[%s1 + $0x4] sm:$0xf]
      %v217 = vld [vmem:[%s1 + $0x8] sm:$0xf]
      %v218 = vld [vmem:[%s1 + $0xc] sm:$0xf]
      %v219 = vld [vmem:[%s1 + $0x10] sm:$0xf]
      %v220 = vld [vmem:[%s1 + $0x14] sm:$0xf]
      %v221 = vld [vmem:[%s1 + $0x18] sm:$0xf]
      %v222 = vld [vmem:[%s1 + $0x1c] sm:$0xf]
      %v223 = vld [vmem:[%s1 + $0x20] sm:$0xf]
      %v224 = vld [vmem:[%s1 + $0x24] sm:$0xf]
      %v225 = vld [vmem:[%s1 + $0x28] sm:$0xf]
      %v226 = vld [vmem:[%s1 + $0x2c] sm:$0xf]
      %v227 = vld [vmem:[%s1 + $0x30] sm:$0xf]
      %v228 = vld [vmem:[%s1 + $0x34] sm:$0xf]
      %v229 = vld [vmem:[%s1 + $0x38] sm:$0xf]
      %v230 = vld [vmem:[%s1 + $0x3c] sm:$0xf]
      %v231 = vld [vmem:[%s1 + $0x40] sm:$0xf]
      %v232 = vld [vmem:[%s1 + $0x44] sm:$0xf]
      %v233 = vld [vmem:[%s1 + $0x48] sm:$0xf]
      %v234 = vld [vmem:[%s1 + $0x4c] sm:$0xf]
      %v235 = vld [vmem:[%s1 + $0x50] sm:$0xf]
      %v236 = vld [vmem:[%s1 + $0x54] sm:$0xf]
      %v237 = vld [vmem:[%s1 + $0x58] sm:$0xf]
      %v238 = vld [vmem:[%s1 + $0x5c] sm:$0xf]
      %v239 = vld [vmem:[%s1 + $0x60] sm:$0xf]
      %v240 = vld [vmem:[%s1 + $0x64] sm:$0xf]
      %v241 = vld [vmem:[%s1 + $0x68] sm:$0xf]
      %v242 = vld [vmem:[%s1 + $0x6c] sm:$0xf]
      %v243 = vld [vmem:[%s1 + $0x70] sm:$0xf]
      %v244 = vld [vmem:[%s1 + $0x74] sm:$0xf]
      %v245 = vld [vmem:[%s1 + $0x78] sm:$0xf]
      %v246 = vld [vmem:[%s1 + $0x7c] sm:$0xf]
      %v247 = vld [vmem:[%s1 + $0x80] sm:$0xf]
      %v248 = vld [vmem:[%s1 + $0x84] sm:$0xf]
      %v249 = vld [vmem:[%s1 + $0x88] sm:$0xf]
      %v250 = vld [vmem:[%s1 + $0x8c] sm:$0xf]
      %v251 = vld [vmem:[%s2] sm:$0x1]
      %v253 = vlaneseq
      %v254 = vshrl.u32 %v253, 7
      %v255 = vsub.s32 0, %v254
      %v256 = vrot.slane %v251, %v255
      %v274 = vunpack.c.l.b16 %v199
      %v275 = vunpack.c.h.b16 %v199
      %v276 = vunpack.c.l.b16 %v200
      %v277 = vunpack.c.l.b16 %v201
      %v278 = vunpack.c.h.b16 %v201
      %v279 = vunpack.c.l.b16 %v202
      %v280 = vunpack.c.l.b16 %v203
      %v281 = vunpack.c.h.b16 %v203
      %v282 = vunpack.c.l.b16 %v204
      %v283 = vunpack.c.l.b16 %v205
      %v284 = vunpack.c.h.b16 %v205
      %v285 = vunpack.c.l.b16 %v206
      %v286 = vunpack.c.l.b16 %v207
      %v287 = vunpack.c.h.b16 %v207
      %v288 = vunpack.c.l.b16 %v208
      %v289 = vunpack.c.l.b16 %v209
      %v290 = vunpack.c.h.b16 %v209
      %v291 = vunpack.c.l.b16 %v210
      %v292 = vunpack.c.l.b16 %v211
      %v293 = vunpack.c.h.b16 %v211
      %v294 = vunpack.c.l.b16 %v212
      %v295 = vunpack.c.l.b16 %v213
      %v296 = vunpack.c.h.b16 %v213
      %v297 = vunpack.c.l.b16 %v214
      %v298 = vpack.c.b16 %v277, %v274
      %v299 = vpack.c.b16 %v278, %v275
      %v300 = vpack.c.b16 %v279, %v276
      %v301 = vpack.c.b16 %v283, %v280
      %v302 = vpack.c.b16 %v284, %v281
      %v303 = vpack.c.b16 %v285, %v282
      %v304 = vpack.c.b16 %v289, %v286
      %v305 = vpack.c.b16 %v290, %v287
      %v306 = vpack.c.b16 %v291, %v288
      %v307 = vpack.c.b16 %v295, %v292
      %v308 = vpack.c.b16 %v296, %v293
      %v309 = vpack.c.b16 %v297, %v294
      %v354 = vunpack.c.l.b16 %v215
      %v355 = vunpack.c.l.b16 %v216
      %v356 = vunpack.c.l.b16 %v217
      %v357 = vunpack.c.l.b16 %v218
      %v358 = vunpack.c.l.b16 %v219
      %v359 = vunpack.c.l.b16 %v220
      %v360 = vunpack.c.l.b16 %v221
      %v361 = vunpack.c.l.b16 %v222
      %v362 = vunpack.c.l.b16 %v223
      %v363 = vunpack.c.l.b16 %v224
      %v364 = vunpack.c.l.b16 %v225
      %v365 = vunpack.c.l.b16 %v226
      %v366 = vunpack.c.l.b16 %v227
      %v367 = vunpack.c.l.b16 %v228
      %v368 = vunpack.c.l.b16 %v229
      %v369 = vunpack.c.l.b16 %v230
      %v370 = vunpack.c.l.b16 %v231
      %v371 = vunpack.c.l.b16 %v232
      %v372 = vunpack.c.l.b16 %v233
      %v373 = vunpack.c.l.b16 %v234
      %v374 = vunpack.c.l.b16 %v235
      %v375 = vunpack.c.l.b16 %v236
      %v376 = vunpack.c.l.b16 %v237
      %v377 = vunpack.c.l.b16 %v238
      %v378 = vunpack.c.l.b16 %v239
      %v379 = vunpack.c.l.b16 %v240
      %v380 = vunpack.c.l.b16 %v241
      %v381 = vunpack.c.l.b16 %v242
      %v382 = vunpack.c.l.b16 %v243
      %v383 = vunpack.c.l.b16 %v244
      %v384 = vunpack.c.l.b16 %v245
      %v385 = vunpack.c.l.b16 %v246
      %v386 = vunpack.c.l.b16 %v247
      %v387 = vunpack.c.l.b16 %v248
      %v388 = vunpack.c.l.b16 %v249
      %v389 = vunpack.c.l.b16 %v250
      %v390 = vpack.c.b16 %v355, %v354
      %v391 = vpack.c.b16 %v357, %v356
      %v392 = vpack.c.b16 %v359, %v358
      %v393 = vpack.c.b16 %v361, %v360
      %v394 = vpack.c.b16 %v363, %v362
      %v395 = vpack.c.b16 %v365, %v364
      %v396 = vpack.c.b16 %v367, %v366
      %v397 = vpack.c.b16 %v369, %v368
      %v398 = vpack.c.b16 %v371, %v370
      %v399 = vpack.c.b16 %v373, %v372
      %v400 = vpack.c.b16 %v375, %v374
      %v401 = vpack.c.b16 %v377, %v376
      %v402 = vpack.c.b16 %v379, %v378
      %v403 = vpack.c.b16 %v381, %v380
      %v404 = vpack.c.b16 %v383, %v382
      %v405 = vpack.c.b16 %v385, %v384
      %v406 = vpack.c.b16 %v387, %v386
      %v407 = vpack.c.b16 %v389, %v388
      %vm426 = vcmask 261120
      %v428 = vsel %vm426, %v300, 0
      %v431 = vsel %vm426, %v303, 0
      %v434 = vsel %vm426, %v306, 0
      %v437 = vsel %vm426, %v309, 0
      %439 = vmatprep.subr.bf16.mxu0 0
      %440 = vmatpush1.bf16.msra.mxu0 %v397
      %441 = vmatprep.subr.bf16.mxu0 0
      %442 = vmatpush1.bf16.msra.mxu0 %v396
      %443 = vmatprep.subr.bf16.mxu0 0
      %444 = vmatpush1.bf16.msra.mxu0 %v395
      %445 = vmatprep.subr.bf16.mxu0 0
      %446 = vmatpush1.bf16.msra.mxu0 %v394
      %447 = vmatprep.subr.bf16.mxu0 0
      %448 = vmatpush1.bf16.msra.mxu0 %v393
      %449 = vmatprep.subr.bf16.mxu0 0
      %450 = vmatpush1.bf16.msra.mxu0 %v392
      %451 = vmatprep.subr.bf16.mxu0 0
      %452 = vmatpush1.bf16.msra.mxu0 %v391
      %453 = vmatprep.subr.bf16.mxu0 0
      %454 = vmatpush1.bf16.msra.mxu0 %v390
      %455 = vmatprep.subr.bf16.mxu0 0
      %456 = vmatpush2.bf16.msra.mxu0 %v405
      %457 = vmatprep.subr.bf16.mxu0 0
      %458 = vmatpush2.bf16.msra.mxu0 %v404
      %459 = vmatprep.subr.bf16.mxu0 0
      %460 = vmatpush2.bf16.msra.mxu0 %v403
      %461 = vmatprep.subr.bf16.mxu0 0
      %462 = vmatpush2.bf16.msra.mxu0 %v402
      %463 = vmatprep.subr.bf16.mxu0 0
      %464 = vmatpush2.bf16.msra.mxu0 %v401
      %465 = vmatprep.subr.bf16.mxu0 0
      %466 = vmatpush2.bf16.msra.mxu0 %v400
      %467 = vmatprep.subr.bf16.mxu0 0
      %468 = vmatpush2.bf16.msra.mxu0 %v399
      %469 = vmatprep.subr.bf16.mxu0 0
      %470 = vmatpush2.bf16.msra.mxu0 %v398
      %471 = vmatprep.mubr.bf16.mxu0 %v299
      %472 = vmatmul.mubr.bf16.gmra.mxu0 %v298
      %v473 = vpop.f32.mrf.mxu0
      %v474 = vadd.f32 %v256, %v473
      %v475 = vpop.f32.mrf.mxu0
      %v476 = vpop.f32.mrf.mxu0
      %v477 = vadd.f32 %v256, %v476
      %v478 = vpop.f32.mrf.mxu0
      %479 = vmatprep.mubr.bf16.mxu0 %v302
      %480 = vmatmul.mubr.bf16.gmra.mxu0 %v301
      %v481 = vpop.f32.mrf.mxu0
      %v482 = vadd.f32 %v256, %v481
      %v483 = vpop.f32.mrf.mxu0
      %v484 = vpop.f32.mrf.mxu0
      %v485 = vadd.f32 %v256, %v484
      %v486 = vpop.f32.mrf.mxu0
      %487 = vmatprep.mubr.bf16.mxu0 %v305
      %488 = vmatmul.mubr.bf16.gmra.mxu0 %v304
      %v489 = vpop.f32.mrf.mxu0
      %v490 = vadd.f32 %v256, %v489
      %v491 = vpop.f32.mrf.mxu0
      %v492 = vpop.f32.mrf.mxu0
      %v493 = vadd.f32 %v256, %v492
      %v494 = vpop.f32.mrf.mxu0
      %495 = vmatprep.mubr.bf16.mxu0 %v308
      %496 = vmatmul.mubr.bf16.gmra.mxu0 %v307
      %v497 = vpop.f32.mrf.mxu0
      %v498 = vadd.f32 %v256, %v497
      %v499 = vpop.f32.mrf.mxu0
      %v500 = vpop.f32.mrf.mxu0
      %v501 = vadd.f32 %v256, %v500
      %v502 = vpop.f32.mrf.mxu0
      %503 = vdwg.mxu0
      %504 = vmatprep.subr.bf16.mxu0 0
      %505 = vmatpush1.bf16.msra.mxu0 0
      %506 = vmatprep.subr.bf16.mxu0 0
      %507 = vmatpush1.bf16.msra.mxu0 0
      %508 = vmatprep.subr.bf16.mxu0 0
      %509 = vmatpush1.bf16.msra.mxu0 0
      %510 = vmatprep.subr.bf16.mxu0 0
      %511 = vmatpush1.bf16.msra.mxu0 0
      %512 = vmatprep.subr.bf16.mxu0 0
      %513 = vmatpush1.bf16.msra.mxu0 0
      %514 = vmatprep.subr.bf16.mxu0 0
      %515 = vmatpush1.bf16.msra.mxu0 0
      %516 = vmatprep.subr.bf16.mxu0 0
      %517 = vmatpush1.bf16.msra.mxu0 %v407
      %518 = vmatprep.subr.bf16.mxu0 0
      %519 = vmatpush1.bf16.msra.mxu0 %v406
      %520 = vmatprep.subr.bf16.mxu0 0
      %521 = vmatpush2.bf16.msra.mxu0 0
      %522 = vmatprep.subr.bf16.mxu0 0
      %523 = vmatpush2.bf16.msra.mxu0 0
      %524 = vmatprep.subr.bf16.mxu0 0
      %525 = vmatpush2.bf16.msra.mxu0 0
      %526 = vmatprep.subr.bf16.mxu0 0
      %527 = vmatpush2.bf16.msra.mxu0 0
      %528 = vmatprep.subr.bf16.mxu0 0
      %529 = vmatpush2.bf16.msra.mxu0 0
      %530 = vmatprep.subr.bf16.mxu0 0
      %531 = vmatpush2.bf16.msra.mxu0 0
      %532 = vmatprep.subr.bf16.mxu0 0
      %533 = vmatpush2.bf16.msra.mxu0 0
      %534 = vmatprep.subr.bf16.mxu0 0
      %535 = vmatpush2.bf16.msra.mxu0 0
      %536 = vmatprep.mubr.bf16.mxu0 0
      %537 = vmatmul.mubr.bf16.gmra.mxu0 %v428
      %v538 = vpop.f32.mrf.mxu0
      %v539 = vadd.f32 %v474, %v538
      %v540 = vpop.f32.mrf.mxu0
      %v541 = vpop.f32.mrf.mxu0
      %v542 = vadd.f32 %v477, %v541
      %v543 = vpop.f32.mrf.mxu0
      %544 = vmatprep.mubr.bf16.mxu0 0
      %545 = vmatmul.mubr.bf16.gmra.mxu0 %v431
      %v546 = vpop.f32.mrf.mxu0
      %v547 = vadd.f32 %v482, %v546
      %v548 = vpop.f32.mrf.mxu0
      %v549 = vpop.f32.mrf.mxu0
      %v550 = vadd.f32 %v485, %v549
      %v551 = vpop.f32.mrf.mxu0
      %552 = vmatprep.mubr.bf16.mxu0 0
      %553 = vmatmul.mubr.bf16.gmra.mxu0 %v434
      %v554 = vpop.f32.mrf.mxu0
      %v555 = vadd.f32 %v490, %v554
      %v556 = vpop.f32.mrf.mxu0
      %v557 = vpop.f32.mrf.mxu0
      %v558 = vadd.f32 %v493, %v557
      %v559 = vpop.f32.mrf.mxu0
      %560 = vmatprep.mubr.bf16.mxu0 0
      %561 = vmatmul.mubr.bf16.gmra.mxu0 %v437
      %v562 = vpop.f32.mrf.mxu0
      %v563 = vadd.f32 %v498, %v562
      %v564 = vpop.f32.mrf.mxu0
      %v565 = vpop.f32.mrf.mxu0
      %v566 = vadd.f32 %v501, %v565
      %v567 = vpop.f32.mrf.mxu0
      %568 = vdwg.mxu0
      %v569 = vmax.f32 %v539, 0.0
      %v570 = vmax.f32 %v542, 0.0
      %v571 = vmax.f32 %v547, 0.0
      %v572 = vmax.f32 %v550, 0.0
      %v573 = vmax.f32 %v555, 0.0
      %v574 = vmax.f32 %v558, 0.0
      %v575 = vmax.f32 %v563, 0.0
      %v576 = vmax.f32 %v566, 0.0
      %v577 = vld [vmem:[%s3] sm:$0xf]
      %v578 = vld [vmem:[%s3 + $0x4] sm:$0xf]
      %v579 = vpack.c.bf16 %v570, %v569
      %v580 = vpack.c.bf16 %v572, %v571
      %v581 = vpack.c.bf16 %v574, %v573
      %v582 = vpack.c.bf16 %v576, %v575
      %v585 = vunpack.c.l.b16 %v577
      %v586 = vunpack.c.l.b16 %v578
      %v587 = vpack.c.b16 %v586, %v585
      %vm588 = vcmask 523264
      %v590 = vsel %vm588, %v587, 0
      %592 = vmatprep.subr.bf16.mxu0 0
      %593 = vmatpush1.bf16.msra.mxu0 0
      %594 = vmatprep.subr.bf16.mxu0 0
      %595 = vmatpush1.bf16.msra.mxu0 0
      %596 = vmatprep.subr.bf16.mxu0 0
      %597 = vmatpush1.bf16.msra.mxu0 0
      %598 = vmatprep.subr.bf16.mxu0 0
      %599 = vmatpush1.bf16.msra.mxu0 0
      %600 = vmatprep.subr.bf16.mxu0 0
      %601 = vmatpush1.bf16.msra.mxu0 %v582
      %602 = vmatprep.subr.bf16.mxu0 0
      %603 = vmatpush1.bf16.msra.mxu0 %v581
      %604 = vmatprep.subr.bf16.mxu0 0
      %605 = vmatpush1.bf16.msra.mxu0 %v580
      %606 = vmatprep.subr.bf16.mxu0 0
      %607 = vmatpush1.bf16.msra.mxu0 %v579
      %608 = vmatprep.subr.bf16.mxu0 0
      %609 = vmatpush2.bf16.msra.mxu0 0
      %610 = vmatprep.subr.bf16.mxu0 0
      %611 = vmatpush2.bf16.msra.mxu0 0
      %612 = vmatprep.subr.bf16.mxu0 0
      %613 = vmatpush2.bf16.msra.mxu0 0
      %614 = vmatprep.subr.bf16.mxu0 0
      %615 = vmatpush2.bf16.msra.mxu0 0
      %616 = vmatprep.subr.bf16.mxu0 0
      %617 = vmatpush2.bf16.msra.mxu0 0
      %618 = vmatprep.subr.bf16.mxu0 0
      %619 = vmatpush2.bf16.msra.mxu0 0
      %620 = vmatprep.subr.bf16.mxu0 0
      %621 = vmatpush2.bf16.msra.mxu0 0
      %622 = vmatprep.subr.bf16.mxu0 0
      %623 = vmatpush2.bf16.msra.mxu0 0
      %624 = vmatprep.mubr.bf16.mxu0 0
      %625 = vmatmul.mubr.bf16.gmra.mxu0 %v590
      %v626 = vpop.f32.mrf.mxu0
      %v627 = vadd.f32 0.0, %v626
      %v628 = vpop.f32.mrf.mxu0
      %v629 = vpop.f32.mrf.mxu0
      %v630 = vadd.f32 0.0, %v629
      %v631 = vpop.f32.mrf.mxu0
      %632 = vdwg.mxu0
      %v633 = vpack.c.bf16 %v630, %v627
      %v635 = vunpack.c.l.b16 %v633
      %v636 = vunpack.c.h.b16 %v633
      %v637 = vpack.c.b16 %v635, %v635
      %v638 = vpack.c.b16 %v636, %v636
      %vm641 = vcmask 519168
      %642 = vst.msk [vmem:[%s197] sm:$0xf] %vm641, %v637
      %643 = vst.msk [vmem:[%s197 + $0x4] sm:$0xf] %vm641, %v638
      %p644 = scmp.lt.s32.totalorder %s15, 1
      %s645 = scalar_select %p644, %s15, 1
      %s646 = smul.addr %s645, 2
      %s647 = smul.addr %s646, 4
      %s648 = scalar_lea.vmem %s4, %s647
      // Predicated region
      $region37: #{discriminator_forward.4} parent=35 // pred_check
        %p649 = pneg %p122
      $region38: #{discriminator_forward.4} parent=35 // pred_check_branch
        %651 = sbr.rel (%p649) target = $region40
      $region39: #{discriminator_forward.4} parent=35 // pred_region
        _
      $region40: #{discriminator_forward.4} parent=35 // pred_fallthru
        _
    $region36: #{discriminator_forward.4} parent=5 // pred_fallthru
      _
    %p652 = scmp.le.s32.totalorder 2, %s10
    // Predicated region
    $region41: #{discriminator_forward.4} parent=5 // pred_check
      %p653 = pneg %p652
    $region42: #{discriminator_forward.4} parent=5 // pred_check_branch
      %655 = sbr.rel (%p653) target = $region44
    $region43: #{discriminator_forward.4} parent=5 // pred_region
      %s656 = ssub.s32 %s10, 2
      // Predicated region
      $region45: #{discriminator_forward.4} parent=43 // pred_check
        %p657 = pneg %p128
      $region46: #{discriminator_forward.4} parent=43 // pred_check_branch
        %659 = sbr.rel (%p657) target = $region48
      $region47: #{discriminator_forward.4} parent=43 // pred_region
        %p660 = scmp.lt.s32.totalorder %s16, 1
        %s661 = scalar_select %p660, %s16, 1
        %s662 = smul.addr %s661, 2
        %s663 = smul.addr %s662, 4
        %s664 = scalar_lea.vmem %s4, %s663
      $region48: #{discriminator_forward.4} parent=43 // pred_fallthru
        _
    $region44: #{discriminator_forward.4} parent=5 // pred_fallthru
      _
  $region6: #{discriminator_forward.4} parent=0 // loop_footer
    %s14 = sadd.s32 1, %s10
  $region7: #{discriminator_forward.4} parent=0 // loop_footer_branch
    %9 = sbr.rel target = $region3
  $region8: #{discriminator_forward.4} parent=0 // loop_exit
    _

// kernel: discriminator_forward.5
$region0: #{discriminator_forward.5}
  #allocation0 [shape = 'u32[]', space=smem, size = 0x4, offset = 0x4, fixed_abs, tag = 'smem constant byte address 0x4 - core index']
  #allocation1 [shape = 'u32[144,128]{1,0:T(1,128)}', space=vmem, size = 0x12000, scoped, tag = 'internal scratch']
  #allocation2 [shape = 'f32[1,1]{1,0:T(1,128)S(1)}', space=vmem, size = 0x200, scoped, tag = 'scoped memory for discriminator_forward.5']
  %s0 = inlined_call_operand.vmem [shape: bf16[32,576], index: 0, kind: input, shape index: {}]
  %s1 = inlined_call_operand.vmem [shape: bf16[576,128], index: 1, kind: input, shape index: {}]
  %s2 = inlined_call_operand.vmem [shape: f32[1,128], index: 2, kind: input, shape index: {}]
  %s3 = inlined_call_operand.vmem [shape: f32[1,128], index: 3, kind: input, shape index: {}]
  %s4 = inlined_call_operand.<no memory space> [shape: f32[1,1], index: 4, kind: input, shape index: {}]
  %s5 = inlined_call_operand.vmem [shape: f32[2,1], index: 5, kind: output, shape index: {}]
  %s6 = sld [smem:[#allocation0]]
  $region30: #{discriminator_forward.5} parent=0
    _
  %s8 = ssub.s32 1, %s6
  %s9 = scalar_select 0, %s8, %s6
  %v10 = vstv %s4
  %11 = vst [vmem:[#allocation2] sm:$0x1] %v10
  // Predicated region
  $region2: #{discriminator_forward.5} parent=0 // pred_check
    _
  $region3: #{discriminator_forward.5} parent=0 // pred_check_branch
    %13 = sbr.rel (0) target = $region5
  $region4: #{discriminator_forward.5} parent=0 // pred_region
    _
  $region5: #{discriminator_forward.5} parent=0 // pred_fallthru
    _
  // Predicated region
  $region6: #{discriminator_forward.5} parent=0 // pred_check
    _
  $region7: #{discriminator_forward.5} parent=0 // pred_check_branch
    %15 = sbr.rel (0) target = $region9
  $region8: #{discriminator_forward.5} parent=0 // pred_region
    _
  $region9: #{discriminator_forward.5} parent=0 // pred_fallthru
    _
  // Predicated region
  $region10: #{discriminator_forward.5} parent=0 // pred_check
    _
  $region11: #{discriminator_forward.5} parent=0 // pred_check_branch
    %17 = sbr.rel (0) target = $region13
  $region12: #{discriminator_forward.5} parent=0 // pred_region
    _
  $region13: #{discriminator_forward.5} parent=0 // pred_fallthru
    _
  // Predicated region
  $region14: #{discriminator_forward.5} parent=0 // pred_check
    _
  $region15: #{discriminator_forward.5} parent=0 // pred_check_branch
    %19 = sbr.rel (0) target = $region17
  $region16: #{discriminator_forward.5} parent=0 // pred_region
    _
  $region17: #{discriminator_forward.5} parent=0 // pred_fallthru
    _
  // Predicated region
  $region18: #{discriminator_forward.5} parent=0 // pred_check
    _
  $region19: #{discriminator_forward.5} parent=0 // pred_check_branch
    %21 = sbr.rel (0) target = $region21
  $region20: #{discriminator_forward.5} parent=0 // pred_region
    _
  $region21: #{discriminator_forward.5} parent=0 // pred_fallthru
    _
  %v23 = vld [vmem:[%s0] sm:$0xff]
  %v24 = vld [vmem:[%s0 + $0x8] sm:$0xff]
  %v25 = vld [vmem:[%s0 + $0x10] sm:$0xf]
  %v26 = vld [vmem:[%s0 + $0x14] sm:$0xff]
  %v27 = vld [vmem:[%s0 + $0x1c] sm:$0xff]
  %v28 = vld [vmem:[%s0 + $0x24] sm:$0xf]
  %v29 = vld [vmem:[%s0 + $0x28] sm:$0xff]
  %v30 = vld [vmem:[%s0 + $0x30] sm:$0xff]
  %v31 = vld [vmem:[%s0 + $0x38] sm:$0xf]
  %v32 = vld [vmem:[%s0 + $0x3c] sm:$0xff]
  %v33 = vld [vmem:[%s0 + $0x44] sm:$0xff]
  %v34 = vld [vmem:[%s0 + $0x4c] sm:$0xf]
  %v35 = vld [vmem:[%s1] sm:$0xf]
  %v36 = vld [vmem:[%s1 + $0x4] sm:$0xf]
  %v37 = vld [vmem:[%s1 + $0x8] sm:$0xf]
  %v38 = vld [vmem:[%s1 + $0xc] sm:$0xf]
  %v39 = vld [vmem:[%s1 + $0x10] sm:$0xf]
  %v40 = vld [vmem:[%s1 + $0x14] sm:$0xf]
  %v41 = vld [vmem:[%s1 + $0x18] sm:$0xf]
  %v42 = vld [vmem:[%s1 + $0x1c] sm:$0xf]
  %v43 = vld [vmem:[%s1 + $0x20] sm:$0xf]
  %v44 = vld [vmem:[%s1 + $0x24] sm:$0xf]
  %v45 = vld [vmem:[%s1 + $0x28] sm:$0xf]
  %v46 = vld [vmem:[%s1 + $0x2c] sm:$0xf]
  %v47 = vld [vmem:[%s1 + $0x30] sm:$0xf]
  %v48 = vld [vmem:[%s1 + $0x34] sm:$0xf]
  %v49 = vld [vmem:[%s1 + $0x38] sm:$0xf]
  %v50 = vld [vmem:[%s1 + $0x3c] sm:$0xf]
  %v51 = vld [vmem:[%s1 + $0x40] sm:$0xf]
  %v52 = vld [vmem:[%s1 + $0x44] sm:$0xf]
  %v53 = vld [vmem:[%s1 + $0x48] sm:$0xf]
  %v54 = vld [vmem:[%s1 + $0x4c] sm:$0xf]
  %v55 = vld [vmem:[%s1 + $0x50] sm:$0xf]
  %v56 = vld [vmem:[%s1 + $0x54] sm:$0xf]
  %v57 = vld [vmem:[%s1 + $0x58] sm:$0xf]
  %v58 = vld [vmem:[%s1 + $0x5c] sm:$0xf]
  %v59 = vld [vmem:[%s1 + $0x60] sm:$0xf]
  %v60 = vld [vmem:[%s1 + $0x64] sm:$0xf]
  %v61 = vld [vmem:[%s1 + $0x68] sm:$0xf]
  %v62 = vld [vmem:[%s1 + $0x6c] sm:$0xf]
  %v63 = vld [vmem:[%s1 + $0x70] sm:$0xf]
  %v64 = vld [vmem:[%s1 + $0x74] sm:$0xf]
  %v65 = vld [vmem:[%s1 + $0x78] sm:$0xf]
  %v66 = vld [vmem:[%s1 + $0x7c] sm:$0xf]
  %v67 = vld [vmem:[%s1 + $0x80] sm:$0xf]
  %v68 = vld [vmem:[%s1 + $0x84] sm:$0xf]
  %v69 = vld [vmem:[%s1 + $0x88] sm:$0xf]
  %v70 = vld [vmem:[%s1 + $0x8c] sm:$0xf]
  %v71 = vld [vmem:[%s1 + $0x90] sm:$0xf]
  %v72 = vld [vmem:[%s1 + $0x94] sm:$0xf]
  %v73 = vld [vmem:[%s1 + $0x98] sm:$0xf]
  %v74 = vld [vmem:[%s1 + $0x9c] sm:$0xf]
  %v75 = vld [vmem:[%s1 + $0xa0] sm:$0xf]
  %v76 = vld [vmem:[%s1 + $0xa4] sm:$0xf]
  %v77 = vld [vmem:[%s1 + $0xa8] sm:$0xf]
  %v78 = vld [vmem:[%s1 + $0xac] sm:$0xf]
  %v79 = vld [vmem:[%s1 + $0xb0] sm:$0xf]
  %v80 = vld [vmem:[%s1 + $0xb4] sm:$0xf]
  %v81 = vld [vmem:[%s1 + $0xb8] sm:$0xf]
  %v82 = vld [vmem:[%s1 + $0xbc] sm:$0xf]
  %v83 = vld [vmem:[%s1 + $0xc0] sm:$0xf]
  %v84 = vld [vmem:[%s1 + $0xc4] sm:$0xf]
  %v85 = vld [vmem:[%s1 + $0xc8] sm:$0xf]
  %v86 = vld [vmem:[%s1 + $0xcc] sm:$0xf]
  %v87 = vld [vmem:[%s1 + $0xd0] sm:$0xf]
  %v88 = vld [vmem:[%s1 + $0xd4] sm:$0xf]
  %v89 = vld [vmem:[%s1 + $0xd8] sm:$0xf]
  %v90 = vld [vmem:[%s1 + $0xdc] sm:$0xf]
  %v91 = vld [vmem:[%s1 + $0xe0] sm:$0xf]
  %v92 = vld [vmem:[%s1 + $0xe4] sm:$0xf]
  %v93 = vld [vmem:[%s1 + $0xe8] sm:$0xf]
  %v94 = vld [vmem:[%s1 + $0xec] sm:$0xf]
  %v95 = vld [vmem:[%s1 + $0xf0] sm:$0xf]
  %v96 = vld [vmem:[%s1 + $0xf4] sm:$0xf]
  %v97 = vld [vmem:[%s1 + $0xf8] sm:$0xf]
  %v98 = vld [vmem:[%s1 + $0xfc] sm:$0xf]
  %v99 = vld [vmem:[%s1 + $0x100] sm:$0xf]
  %v100 = vld [vmem:[%s1 + $0x104] sm:$0xf]
  %v101 = vld [vmem:[%s1 + $0x108] sm:$0xf]
  %v102 = vld [vmem:[%s1 + $0x10c] sm:$0xf]
  %v103 = vld [vmem:[%s1 + $0x110] sm:$0xf]
  %v104 = vld [vmem:[%s1 + $0x114] sm:$0xf]
  %v105 = vld [vmem:[%s1 + $0x118] sm:$0xf]
  %v106 = vld [vmem:[%s1 + $0x11c] sm:$0xf]
  %v107 = vld [vmem:[%s2] sm:$0x1]
  %v109 = vlaneseq
  %v110 = vshrl.u32 %v109, 7
  %v111 = vsub.s32 0, %v110
  %v112 = vrot.slane %v107, %v111
  %v126 = vunpack.c.l.b16 %v23
  %v127 = vunpack.c.h.b16 %v23
  %v128 = vunpack.c.l.b16 %v24
  %v129 = vunpack.c.h.b16 %v24
  %v130 = vunpack.c.l.b16 %v25
  %v131 = vunpack.c.l.b16 %v26
  %v132 = vunpack.c.h.b16 %v26
  %v133 = vunpack.c.l.b16 %v27
  %v134 = vunpack.c.h.b16 %v27
  %v135 = vunpack.c.l.b16 %v28
  %v136 = vunpack.c.l.b16 %v29
  %v137 = vunpack.c.h.b16 %v29
  %v138 = vunpack.c.l.b16 %v30
  %v139 = vunpack.c.h.b16 %v30
  %v140 = vunpack.c.l.b16 %v31
  %v141 = vunpack.c.l.b16 %v32
  %v142 = vunpack.c.h.b16 %v32
  %v143 = vunpack.c.l.b16 %v33
  %v144 = vunpack.c.h.b16 %v33
  %v145 = vunpack.c.l.b16 %v34
  %v146 = vpack.c.b16 %v131, %v126
  %v147 = vpack.c.b16 %v132, %v127
  %v148 = vpack.c.b16 %v133, %v128
  %v149 = vpack.c.b16 %v134, %v129
  %v150 = vpack.c.b16 %v135, %v130
  %v151 = vpack.c.b16 %v141, %v136
  %v152 = vpack.c.b16 %v142, %v137
  %v153 = vpack.c.b16 %v143, %v138
  %v154 = vpack.c.b16 %v144, %v139
  %v155 = vpack.c.b16 %v145, %v140
  %v236 = vunpack.c.l.b16 %v35
  %v237 = vunpack.c.l.b16 %v36
  %v238 = vunpack.c.l.b16 %v37
  %v239 = vunpack.c.l.b16 %v38
  %v240 = vunpack.c.l.b16 %v39
  %v241 = vunpack.c.l.b16 %v40
  %v242 = vunpack.c.l.b16 %v41
  %v243 = vunpack.c.l.b16 %v42
  %v244 = vunpack.c.l.b16 %v43
  %v245 = vunpack.c.l.b16 %v44
  %v246 = vunpack.c.l.b16 %v45
  %v247 = vunpack.c.l.b16 %v46
  %v248 = vunpack.c.l.b16 %v47
  %v249 = vunpack.c.l.b16 %v48
  %v250 = vunpack.c.l.b16 %v49
  %v251 = vunpack.c.l.b16 %v50
  %v252 = vunpack.c.l.b16 %v51
  %v253 = vunpack.c.l.b16 %v52
  %v254 = vunpack.c.l.b16 %v53
  %v255 = vunpack.c.l.b16 %v54
  %v256 = vunpack.c.l.b16 %v55
  %v257 = vunpack.c.l.b16 %v56
  %v258 = vunpack.c.l.b16 %v57
  %v259 = vunpack.c.l.b16 %v58
  %v260 = vunpack.c.l.b16 %v59
  %v261 = vunpack.c.l.b16 %v60
  %v262 = vunpack.c.l.b16 %v61
  %v263 = vunpack.c.l.b16 %v62
  %v264 = vunpack.c.l.b16 %v63
  %v265 = vunpack.c.l.b16 %v64
  %v266 = vunpack.c.l.b16 %v65
  %v267 = vunpack.c.l.b16 %v66
  %v268 = vunpack.c.l.b16 %v67
  %v269 = vunpack.c.l.b16 %v68
  %v270 = vunpack.c.l.b16 %v69
  %v271 = vunpack.c.l.b16 %v70
  %v272 = vunpack.c.l.b16 %v71
  %v273 = vunpack.c.l.b16 %v72
  %v274 = vunpack.c.l.b16 %v73
  %v275 = vunpack.c.l.b16 %v74
  %v276 = vunpack.c.l.b16 %v75
  %v277 = vunpack.c.l.b16 %v76
  %v278 = vunpack.c.l.b16 %v77
  %v279 = vunpack.c.l.b16 %v78
  %v280 = vunpack.c.l.b16 %v79
  %v281 = vunpack.c.l.b16 %v80
  %v282 = vunpack.c.l.b16 %v81
  %v283 = vunpack.c.l.b16 %v82
  %v284 = vunpack.c.l.b16 %v83
  %v285 = vunpack.c.l.b16 %v84
  %v286 = vunpack.c.l.b16 %v85
  %v287 = vunpack.c.l.b16 %v86
  %v288 = vunpack.c.l.b16 %v87
  %v289 = vunpack.c.l.b16 %v88
  %v290 = vunpack.c.l.b16 %v89
  %v291 = vunpack.c.l.b16 %v90
  %v292 = vunpack.c.l.b16 %v91
  %v293 = vunpack.c.l.b16 %v92
  %v294 = vunpack.c.l.b16 %v93
  %v295 = vunpack.c.l.b16 %v94
  %v296 = vunpack.c.l.b16 %v95
  %v297 = vunpack.c.l.b16 %v96
  %v298 = vunpack.c.l.b16 %v97
  %v299 = vunpack.c.l.b16 %v98
  %v300 = vunpack.c.l.b16 %v99
  %v301 = vunpack.c.l.b16 %v100
  %v302 = vunpack.c.l.b16 %v101
  %v303 = vunpack.c.l.b16 %v102
  %v304 = vunpack.c.l.b16 %v103
  %v305 = vunpack.c.l.b16 %v104
  %v306 = vunpack.c.l.b16 %v105
  %v307 = vunpack.c.l.b16 %v106
  %v308 = vpack.c.b16 %v237, %v236
  %v309 = vpack.c.b16 %v239, %v238
  %v310 = vpack.c.b16 %v241, %v240
  %v311 = vpack.c.b16 %v243, %v242
  %v312 = vpack.c.b16 %v245, %v244
  %v313 = vpack.c.b16 %v247, %v246
  %v314 = vpack.c.b16 %v249, %v248
  %v315 = vpack.c.b16 %v251, %v250
  %v316 = vpack.c.b16 %v253, %v252
  %v317 = vpack.c.b16 %v255, %v254
  %v318 = vpack.c.b16 %v257, %v256
  %v319 = vpack.c.b16 %v259, %v258
  %v320 = vpack.c.b16 %v261, %v260
  %v321 = vpack.c.b16 %v263, %v262
  %v322 = vpack.c.b16 %v265, %v264
  %v323 = vpack.c.b16 %v267, %v266
  %v324 = vpack.c.b16 %v269, %v268
  %v325 = vpack.c.b16 %v271, %v270
  %v326 = vpack.c.b16 %v273, %v272
  %v327 = vpack.c.b16 %v275, %v274
  %v328 = vpack.c.b16 %v277, %v276
  %v329 = vpack.c.b16 %v279, %v278
  %v330 = vpack.c.b16 %v281, %v280
  %v331 = vpack.c.b16 %v283, %v282
  %v332 = vpack.c.b16 %v285, %v284
  %v333 = vpack.c.b16 %v287, %v286
  %v334 = vpack.c.b16 %v289, %v288
  %v335 = vpack.c.b16 %v291, %v290
  %v336 = vpack.c.b16 %v293, %v292
  %v337 = vpack.c.b16 %v295, %v294
  %v338 = vpack.c.b16 %v297, %v296
  %v339 = vpack.c.b16 %v299, %v298
  %v340 = vpack.c.b16 %v301, %v300
  %v341 = vpack.c.b16 %v303, %v302
  %v342 = vpack.c.b16 %v305, %v304
  %v343 = vpack.c.b16 %v307, %v306
  %vm380 = vcmask 523264
  %v382 = vsel %vm380, %v150, 0
  %v385 = vsel %vm380, %v155, 0
  %387 = vmatprep.subr.bf16.mxu0 0
  %388 = vmatpush1.bf16.msra.mxu0 %v315
  %389 = vmatprep.subr.bf16.mxu0 0
  %390 = vmatpush1.bf16.msra.mxu0 %v314
  %391 = vmatprep.subr.bf16.mxu0 0
  %392 = vmatpush1.bf16.msra.mxu0 %v313
  %393 = vmatprep.subr.bf16.mxu0 0
  %394 = vmatpush1.bf16.msra.mxu0 %v312
  %395 = vmatprep.subr.bf16.mxu0 0
  %396 = vmatpush1.bf16.msra.mxu0 %v311
  %397 = vmatprep.subr.bf16.mxu0 0
  %398 = vmatpush1.bf16.msra.mxu0 %v310
  %399 = vmatprep.subr.bf16.mxu0 0
  %400 = vmatpush1.bf16.msra.mxu0 %v309
  %401 = vmatprep.subr.bf16.mxu0 0
  %402 = vmatpush1.bf16.msra.mxu0 %v308
  %403 = vmatprep.subr.bf16.mxu0 0
  %404 = vmatpush2.bf16.msra.mxu0 %v323
  %405 = vmatprep.subr.bf16.mxu0 0
  %406 = vmatpush2.bf16.msra.mxu0 %v322
  %407 = vmatprep.subr.bf16.mxu0 0
  %408 = vmatpush2.bf16.msra.mxu0 %v321
  %409 = vmatprep.subr.bf16.mxu0 0
  %410 = vmatpush2.bf16.msra.mxu0 %v320
  %411 = vmatprep.subr.bf16.mxu0 0
  %412 = vmatpush2.bf16.msra.mxu0 %v319
  %413 = vmatprep.subr.bf16.mxu0 0
  %414 = vmatpush2.bf16.msra.mxu0 %v318
  %415 = vmatprep.subr.bf16.mxu0 0
  %416 = vmatpush2.bf16.msra.mxu0 %v317
  %417 = vmatprep.subr.bf16.mxu0 0
  %418 = vmatpush2.bf16.msra.mxu0 %v316
  %419 = vmatprep.mubr.bf16.mxu0 %v147
  %420 = vmatmul.mubr.bf16.gmra.mxu0 %v146
  %v421 = vpop.f32.mrf.mxu0
  %v422 = vadd.f32 %v112, %v421
  %v423 = vpop.f32.mrf.mxu0
  %v424 = vpop.f32.mrf.mxu0
  %v425 = vadd.f32 %v112, %v424
  %v426 = vpop.f32.mrf.mxu0
  %427 = vmatprep.mubr.bf16.mxu0 %v152
  %428 = vmatmul.mubr.bf16.gmra.mxu0 %v151
  %v429 = vpop.f32.mrf.mxu0
  %v430 = vadd.f32 %v112, %v429
  %v431 = vpop.f32.mrf.mxu0
  %v432 = vpop.f32.mrf.mxu0
  %v433 = vadd.f32 %v112, %v432
  %v434 = vpop.f32.mrf.mxu0
  %435 = vdwg.mxu0
  %436 = vmatprep.subr.bf16.mxu0 0
  %437 = vmatpush1.bf16.msra.mxu0 %v331
  %438 = vmatprep.subr.bf16.mxu0 0
  %439 = vmatpush1.bf16.msra.mxu0 %v330
  %440 = vmatprep.subr.bf16.mxu0 0
  %441 = vmatpush1.bf16.msra.mxu0 %v329
  %442 = vmatprep.subr.bf16.mxu0 0
  %443 = vmatpush1.bf16.msra.mxu0 %v328
  %444 = vmatprep.subr.bf16.mxu0 0
  %445 = vmatpush1.bf16.msra.mxu0 %v327
  %446 = vmatprep.subr.bf16.mxu0 0
  %447 = vmatpush1.bf16.msra.mxu0 %v326
  %448 = vmatprep.subr.bf16.mxu0 0
  %449 = vmatpush1.bf16.msra.mxu0 %v325
  %450 = vmatprep.subr.bf16.mxu0 0
  %451 = vmatpush1.bf16.msra.mxu0 %v324
  %452 = vmatprep.subr.bf16.mxu0 0
  %453 = vmatpush2.bf16.msra.mxu0 %v339
  %454 = vmatprep.subr.bf16.mxu0 0
  %455 = vmatpush2.bf16.msra.mxu0 %v338
  %456 = vmatprep.subr.bf16.mxu0 0
  %457 = vmatpush2.bf16.msra.mxu0 %v337
  %458 = vmatprep.subr.bf16.mxu0 0
  %459 = vmatpush2.bf16.msra.mxu0 %v336
  %460 = vmatprep.subr.bf16.mxu0 0
  %461 = vmatpush2.bf16.msra.mxu0 %v335
  %462 = vmatprep.subr.bf16.mxu0 0
  %463 = vmatpush2.bf16.msra.mxu0 %v334
  %464 = vmatprep.subr.bf16.mxu0 0
  %465 = vmatpush2.bf16.msra.mxu0 %v333
  %466 = vmatprep.subr.bf16.mxu0 0
  %467 = vmatpush2.bf16.msra.mxu0 %v332
  %468 = vmatprep.mubr.bf16.mxu0 %v149
  %469 = vmatmul.mubr.bf16.gmra.mxu0 %v148
  %v470 = vpop.f32.mrf.mxu0
  %v471 = vadd.f32 %v422, %v470
  %v472 = vpop.f32.mrf.mxu0
  %v473 = vpop.f32.mrf.mxu0
  %v474 = vadd.f32 %v425, %v473
  %v475 = vpop.f32.mrf.mxu0
  %476 = vmatprep.mubr.bf16.mxu0 %v154
  %477 = vmatmul.mubr.bf16.gmra.mxu0 %v153
  %v478 = vpop.f32.mrf.mxu0
  %v479 = vadd.f32 %v430, %v478
  %v480 = vpop.f32.mrf.mxu0
  %v481 = vpop.f32.mrf.mxu0
  %v482 = vadd.f32 %v433, %v481
  %v483 = vpop.f32.mrf.mxu0
  %484 = vdwg.mxu0
  %485 = vmatprep.subr.bf16.mxu0 0
  %486 = vmatpush1.bf16.msra.mxu0 0
  %487 = vmatprep.subr.bf16.mxu0 0
  %488 = vmatpush1.bf16.msra.mxu0 0
  %489 = vmatprep.subr.bf16.mxu0 0
  %490 = vmatpush1.bf16.msra.mxu0 0
  %491 = vmatprep.subr.bf16.mxu0 0
  %492 = vmatpush1.bf16.msra.mxu0 0
  %493 = vmatprep.subr.bf16.mxu0 0
  %494 = vmatpush1.bf16.msra.mxu0 %v343
  %495 = vmatprep.subr.bf16.mxu0 0
  %496 = vmatpush1.bf16.msra.mxu0 %v342
  %497 = vmatprep.subr.bf16.mxu0 0
  %498 = vmatpush1.bf16.msra.mxu0 %v341
  %499 = vmatprep.subr.bf16.mxu0 0
  %500 = vmatpush1.bf16.msra.mxu0 %v340
  %501 = vmatprep.subr.bf16.mxu0 0
  %502 = vmatpush2.bf16.msra.mxu0 0
  %503 = vmatprep.subr.bf16.mxu0 0
  %504 = vmatpush2.bf16.msra.mxu0 0
  %505 = vmatprep.subr.bf16.mxu0 0
  %506 = vmatpush2.bf16.msra.mxu0 0
  %507 = vmatprep.subr.bf16.mxu0 0
  %508 = vmatpush2.bf16.msra.mxu0 0
  %509 = vmatprep.subr.bf16.mxu0 0
  %510 = vmatpush2.bf16.msra.mxu0 0
  %511 = vmatprep.subr.bf16.mxu0 0
  %512 = vmatpush2.bf16.msra.mxu0 0
  %513 = vmatprep.subr.bf16.mxu0 0
  %514 = vmatpush2.bf16.msra.mxu0 0
  %515 = vmatprep.subr.bf16.mxu0 0
  %516 = vmatpush2.bf16.msra.mxu0 0
  %517 = vmatprep.mubr.bf16.mxu0 0
  %518 = vmatmul.mubr.bf16.gmra.mxu0 %v382
  %v519 = vpop.f32.mrf.mxu0
  %v520 = vadd.f32 %v471, %v519
  %v521 = vpop.f32.mrf.mxu0
  %v522 = vpop.f32.mrf.mxu0
  %v523 = vadd.f32 %v474, %v522
  %v524 = vpop.f32.mrf.mxu0
  %525 = vmatprep.mubr.bf16.mxu0 0
  %526 = vmatmul.mubr.bf16.gmra.mxu0 %v385
  %v527 = vpop.f32.mrf.mxu0
  %v528 = vadd.f32 %v479, %v527
  %v529 = vpop.f32.mrf.mxu0
  %v530 = vpop.f32.mrf.mxu0
  %v531 = vadd.f32 %v482, %v530
  %v532 = vpop.f32.mrf.mxu0
  %533 = vdwg.mxu0
  %v534 = vmax.f32 %v520, 0.0
  %v535 = vmax.f32 %v523, 0.0
  %v536 = vmax.f32 %v528, 0.0
  %v537 = vmax.f32 %v531, 0.0
  %v538 = vadd.f32 %v534, %v535
  %v539 = vrot.slane %v538, 4
  %v540 = vadd.f32 %v538, %v539
  %v541 = vrot.slane %v540, 2
  %v542 = vadd.f32 %v540, %v541
  %v543 = vrot.slane %v542, 1
  %v544 = vadd.f32 %v542, %v543
  %v545 = vrcp.pop 16.0
  %v546 = vmul.f32 %v544, %v545
  %v547 = vadd.f32 %v536, %v537
  %v548 = vrot.slane %v547, 4
  %v549 = vadd.f32 %v547, %v548
  %v550 = vrot.slane %v549, 2
  %v551 = vadd.f32 %v549, %v550
  %v552 = vrot.slane %v551, 1
  %v553 = vadd.f32 %v551, %v552
  %v554 = vmul.f32 %v553, %v545
  %vm555 = vcmask 1040384
  %v556 = vsel %vm555, %v546, %v554
  %v557 = vld [vmem:[%s3] sm:$0x1]
  %v559 = vlaneseq
  %v560 = vshrl.u32 %v559, 7
  %v561 = vsub.s32 0, %v560
  %v562 = vrot.slane %v557, %v561
  %v564 = vmul.f32 %v556, %v562
  %vm565 = vcmask 1041408
  %v566 = vsel %vm565, %v564, 0.0
  %567 = vadd.xlane.f32.xlu0 %v566
  %v568 = vpop.xlane.xlu0 %567
  %v569 = vld [vmem:[#allocation2] sm:$0x1]
  %v571 = vlaneseq
  %v572 = vshrl.u32 %v571, 7
  %v573 = vsub.s32 0, %v572
  %v574 = vrot.slane %v569, %v573
  %v576 = vadd.f32 %v568, %v574
  %v577 = vsub.f32 0.0, %v576
  %v578 = vmul.f32 %v577, 1.442695
  %v579 = vpow.pop %v578
  %v580 = vadd.f32 %v579, 1.0
  %v581 = vrcp.pop %v580
  %v582 = vmul.f32 1.0, %v581
  %vm583 = vcmask 1024
  %584 = vst.msk [vmem:[%s5] sm:$0x3] %vm583, %v582
  // Predicated region
  $region22: #{discriminator_forward.5} parent=0 // pred_check
    _
  $region23: #{discriminator_forward.5} parent=0 // pred_check_branch
    %586 = sbr.rel (0) target = $region25
  $region24: #{discriminator_forward.5} parent=0 // pred_region
    _
  $region25: #{discriminator_forward.5} parent=0 // pred_fallthru
    _
  // Predicated region
  $region26: #{discriminator_forward.5} parent=0 // pred_check
    _
  $region27: #{discriminator_forward.5} parent=0 // pred_check_branch
    %588 = sbr.rel (0) target = $region29
  $region28: #{discriminator_forward.5} parent=0 // pred_region
    _
  $region29: #{discriminator_forward.5} parent=0 // pred_fallthru
    _

</llo_original>
